<compile_context>
chip_gen: v6e
topology: v6e:2x2x1
jax: 0.10.0
libtpu: 0.0.40
codegen_flags: <defaults>
</compile_context>

<pallas_src>
import jax
import jax.numpy as jnp
from jax.experimental import pallas as pl
from jax.experimental.pallas import tpu as pltpu

# ---- model dimensions (small, consistent with the module's forward) ----
N_POINTS = 256       # number of voxels / points in the cloud
BATCH = 2            # number of events (batch ids) in the cloud
PC_COLS = 5          # point cloud columns: [batch_id, x, y, z, value]
NUM_FEATURES = 32    # encoder.num_features (latent size)
NUM_CLASSES = 5      # cfg['particle_image_classifier'].get('num_classes', 5)
CHUNK = 128          # rows of the point cloud processed per loop step
PARAM_COLS = 128     # lane width of every parameter block

# ---- header buffer (f32, (16, 128)): row-vectors used on the VPU path ----
_H_WX, _H_WY, _H_WZ, _H_WV = 0, 1, 2, 3   # embedding rows (coords pre-scaled by 1/16)
_H_BEMB, _H_B1, _H_B2, _H_B3, _H_B4, _H_BFIN = 4, 5, 6, 7, 8, 9
_H_CNT = 10                               # one-hot 1.0 at lane NUM_FEATURES (count lane)
HDR_ROWS = 16

# ---- weight buffer (bf16, (640, 128)): five full 128x128 blocks ----
_R_W1, _R_W2, _R_W3, _R_W4, _R_WFIN = 0, 128, 256, 384, 512
W_ROWS = 640


def _classifier_kernel(pc_ref, hdr_ref, w_ref, out_ref):
    f32, bf16 = jnp.float32, jnp.bfloat16
    F = NUM_FEATURES

    # ---- hoisted, loop-invariant parameter loads (full-lane, unmasked) ----
    hdr = hdr_ref[...]                                    # (16, 128) f32
    wx = hdr[_H_WX:_H_WX + 1, :]
    wy = hdr[_H_WY:_H_WY + 1, :]
    wz = hdr[_H_WZ:_H_WZ + 1, :]
    wv = hdr[_H_WV:_H_WV + 1, :]
    b_emb = hdr[_H_BEMB:_H_BEMB + 1, :]
    b1 = hdr[_H_B1:_H_B1 + 1, :]
    b2 = hdr[_H_B2:_H_B2 + 1, :]
    b3 = hdr[_H_B3:_H_B3 + 1, :]
    b4 = hdr[_H_B4:_H_B4 + 1, :]
    b_fin = hdr[_H_BFIN:_H_BFIN + 1, :]
    cnt1 = hdr[_H_CNT:_H_CNT + 1, :]                      # 1.0 at lane F, else 0

    w1 = w_ref[_R_W1:_R_W1 + PARAM_COLS, :]               # (128, 128) bf16
    w2 = w_ref[_R_W2:_R_W2 + PARAM_COLS, :]
    w3 = w_ref[_R_W3:_R_W3 + PARAM_COLS, :]
    w4 = w_ref[_R_W4:_R_W4 + PARAM_COLS, :]
    w_fin = w_ref[_R_WFIN:_R_WFIN + PARAM_COLS, :]

    def body(i, sums):
        start = pl.multiple_of(i * CHUNK, CHUNK)
        pc_c = pc_ref[pl.ds(start, CHUNK), :]             # (CHUNK, 5) f32
        bid = pc_c[:, 0:1]                                 # (CHUNK, 1)

        # Point embedding: 4 broadcast FMAs on the VPU (no K=5 MXU pass, no
        # LHS relayout); /16 coord normalization is folded into wx/wy/wz and
        # the batch-id column is dropped for free.
        h = jnp.maximum(pc_c[:, 1:2] * wx + pc_c[:, 2:3] * wy +
                        pc_c[:, 3:4] * wz + pc_c[:, 4:5] * wv + b_emb, 0.0)

        # Residual block 1 (dense stand-in for a sparse residual conv block):
        # bf16 MXU inputs, f32 accumulation, f32 elementwise.
        y = jnp.maximum(
            jnp.dot(h.astype(bf16), w1, preferred_element_type=f32) + b1, 0.0)
        y = jnp.dot(y.astype(bf16), w2, preferred_element_type=f32) + b2
        h = jnp.maximum(h + y, 0.0)

        # Residual block 2
        y = jnp.maximum(
            jnp.dot(h.astype(bf16), w3, preferred_element_type=f32) + b3, 0.0)
        y = jnp.dot(y.astype(bf16), w4, preferred_element_type=f32) + b4
        h = jnp.maximum(h + y, 0.0)                        # (CHUNK, 128), lanes >= F are 0

        # Fold the per-point count into lane F (exactly zero up to here), so
        # the masked segmented sum produces feature sums and counts together.
        h = h + cnt1

        # Per-batch masked partial sums: one VPU select + one XLU sublane
        # reduce per batch per chunk (4 reduces total over the whole cloud).
        return tuple(
            sums[b] + jnp.sum(jnp.where(bid == f32(b), h, 0.0),
                              axis=0, keepdims=True)
            for b in range(BATCH))

    init = tuple(jnp.zeros((1, PARAM_COLS), f32) for _ in range(BATCH))
    sums = jax.lax.fori_loop(0, N_POINTS // CHUNK, body, init, unroll=True)
    sums = jnp.concatenate(list(sums), axis=0)             # (B, 128) f32

    # Per-batch global average pool; empty batches get their count clamped to
    # 1 (pooled feature 0 -> logits = final-layer bias).  Exact reciprocal
    # (approx=False) — it is off the critical path and improves parity.
    counts = sums[:, F:F + 1]                               # (B, 1) count lane
    pooled = sums * pl.reciprocal(jnp.maximum(counts, 1.0), approx=False)

    # final_layer: nn.Linear(num_features, num_classes), lane-padded to 128.
    out_ref[...] = (jnp.dot(pooled.astype(bf16), w_fin,
                            preferred_element_type=f32) + b_fin)


def _make_params(key):
    """Deterministic synthetic parameters, packed into header + bf16 weights."""
    ks = jax.random.split(key, 6)
    F = NUM_FEATURES

    def lin(k, fan_in, fan_out):
        scale = 1.0 / jnp.sqrt(jnp.float32(fan_in))
        return jax.random.normal(k, (fan_in, fan_out), jnp.float32) * scale

    w_emb = lin(ks[0], 4, F)          # rows: x, y, z, value
    w1, w2 = lin(ks[1], F, F), lin(ks[2], F, F)
    w3, w4 = lin(ks[3], F, F), lin(ks[4], F, F)
    w_fin = lin(ks[5], F, NUM_CLASSES)
    # biases are zero (matches the previous kernel's parameterization)

    hdr = jnp.zeros((HDR_ROWS, PARAM_COLS), jnp.float32)
    hdr = hdr.at[_H_WX:_H_WZ + 1, :F].set(w_emb[0:3] / 16.0)   # fold /16 coord norm
    hdr = hdr.at[_H_WV, :F].set(w_emb[3])
    hdr = hdr.at[_H_CNT, F].set(1.0)                            # count one-hot lane

    w = jnp.zeros((W_ROWS, PARAM_COLS), jnp.float32)
    w = w.at[_R_W1:_R_W1 + F, :F].set(w1)
    w = w.at[_R_W2:_R_W2 + F, :F].set(w2)
    w = w.at[_R_W3:_R_W3 + F, :F].set(w3)
    w = w.at[_R_W4:_R_W4 + F, :F].set(w4)
    w = w.at[_R_WFIN:_R_WFIN + F, :NUM_CLASSES].set(w_fin)
    return hdr, w.astype(jnp.bfloat16)


@jax.jit
def _forward(point_cloud, hdr, weights):
    vmem = pltpu.MemorySpace.VMEM
    out_padded = pl.pallas_call(
        _classifier_kernel,
        out_shape=jax.ShapeDtypeStruct((BATCH, PARAM_COLS), jnp.float32),
        in_specs=[pl.BlockSpec(memory_space=vmem),
                  pl.BlockSpec(memory_space=vmem),
                  pl.BlockSpec(memory_space=vmem)],
        out_specs=pl.BlockSpec(memory_space=vmem),
    )(point_cloud, hdr, weights)
    return out_padded[:, :NUM_CLASSES]


def particle_image_classifier(point_cloud, hdr, weights):
    """Forward pass. point_cloud: (N, 5) = [batch_id, x, y, z, value]."""
    logits = _forward(point_cloud, hdr, weights)
    print(logits.shape)            # mirrors the PyTorch module's print(out.shape)
    return {'logits': [logits]}


if __name__ == "__main__":
    key = jax.random.PRNGKey(0)
    k_params, k_xyz, k_val = jax.random.split(key, 3)

    hdr, weights = _make_params(k_params)

    # deterministic example point cloud: half the points in batch 0, half in 1
    batch_col = jnp.concatenate(
        [jnp.zeros((N_POINTS // 2, 1), jnp.float32),
         jnp.ones((N_POINTS - N_POINTS // 2, 1), jnp.float32)], axis=0)
    xyz = jax.random.uniform(k_xyz, (N_POINTS, 3), jnp.float32, 0.0, 16.0)
    val = jax.random.uniform(k_val, (N_POINTS, 1), jnp.float32, 0.0, 1.0)
    point_cloud = jnp.concatenate([batch_col, xyz, val], axis=1)         # (N, 5)

    res = particle_image_classifier(point_cloud, hdr, weights)
    out = jax.block_until_ready(res['logits'][0])
    assert out.shape == (BATCH, NUM_CLASSES)
    assert jnp.all(jnp.isfinite(out))
    print("KERNEL_OK")
</pallas_src>

<mosaic_0001>
module attributes {stable_mosaic.version = 11 : i64} {
  func.func @_classifier_kernel(%arg0: memref<256x5xf32, #tpu.memory_space<vmem>>, %arg1: memref<16x128xf32, #tpu.memory_space<vmem>>, %arg2: memref<640x128xbf16, #tpu.memory_space<vmem>>, %arg3: memref<2x128xf32, #tpu.memory_space<vmem>>) attributes {dimension_semantics = [], scalar_prefetch = 0 : i64, scratch_operands = 0 : i64, tpu.core_type = #tpu.core_type<tc>} {
    %c0 = arith.constant 0 : index
    %c0_0 = arith.constant 0 : index
    %0 = vector.load %arg1[%c0, %c0_0] : memref<16x128xf32, #tpu.memory_space<vmem>>, vector<16x128xf32>
    %1 = vector.extract_strided_slice %0 {offsets = [0, 0], sizes = [1, 128], strides = [1, 1]} : vector<16x128xf32> to vector<1x128xf32>
    %2 = vector.extract_strided_slice %0 {offsets = [1, 0], sizes = [1, 128], strides = [1, 1]} : vector<16x128xf32> to vector<1x128xf32>
    %3 = vector.extract_strided_slice %0 {offsets = [2, 0], sizes = [1, 128], strides = [1, 1]} : vector<16x128xf32> to vector<1x128xf32>
    %4 = vector.extract_strided_slice %0 {offsets = [3, 0], sizes = [1, 128], strides = [1, 1]} : vector<16x128xf32> to vector<1x128xf32>
    %5 = vector.extract_strided_slice %0 {offsets = [4, 0], sizes = [1, 128], strides = [1, 1]} : vector<16x128xf32> to vector<1x128xf32>
    %6 = vector.extract_strided_slice %0 {offsets = [5, 0], sizes = [1, 128], strides = [1, 1]} : vector<16x128xf32> to vector<1x128xf32>
    %7 = vector.extract_strided_slice %0 {offsets = [6, 0], sizes = [1, 128], strides = [1, 1]} : vector<16x128xf32> to vector<1x128xf32>
    %8 = vector.extract_strided_slice %0 {offsets = [7, 0], sizes = [1, 128], strides = [1, 1]} : vector<16x128xf32> to vector<1x128xf32>
    %9 = vector.extract_strided_slice %0 {offsets = [8, 0], sizes = [1, 128], strides = [1, 1]} : vector<16x128xf32> to vector<1x128xf32>
    %10 = vector.extract_strided_slice %0 {offsets = [9, 0], sizes = [1, 128], strides = [1, 1]} : vector<16x128xf32> to vector<1x128xf32>
    %11 = vector.extract_strided_slice %0 {offsets = [10, 0], sizes = [1, 128], strides = [1, 1]} : vector<16x128xf32> to vector<1x128xf32>
    %c0_1 = arith.constant 0 : index
    %c0_2 = arith.constant 0 : index
    %12 = vector.load %arg2[%c0_1, %c0_2] : memref<640x128xbf16, #tpu.memory_space<vmem>>, vector<128x128xbf16>
    %c128 = arith.constant 128 : index
    %c0_3 = arith.constant 0 : index
    %13 = vector.load %arg2[%c128, %c0_3] : memref<640x128xbf16, #tpu.memory_space<vmem>>, vector<128x128xbf16>
    %c256 = arith.constant 256 : index
    %c0_4 = arith.constant 0 : index
    %14 = vector.load %arg2[%c256, %c0_4] : memref<640x128xbf16, #tpu.memory_space<vmem>>, vector<128x128xbf16>
    %c384 = arith.constant 384 : index
    %c0_5 = arith.constant 0 : index
    %15 = vector.load %arg2[%c384, %c0_5] : memref<640x128xbf16, #tpu.memory_space<vmem>>, vector<128x128xbf16>
    %c512 = arith.constant 512 : index
    %c0_6 = arith.constant 0 : index
    %16 = vector.load %arg2[%c512, %c0_6] : memref<640x128xbf16, #tpu.memory_space<vmem>>, vector<128x128xbf16>
    %cst = arith.constant 0.000000e+00 : f32
    %17 = vector.broadcast %cst : f32 to vector<1x128xf32>
    %cst_7 = arith.constant 0.000000e+00 : f32
    %18 = vector.broadcast %cst_7 : f32 to vector<1x128xf32>
    %c0_i32 = arith.constant 0 : i32
    %c128_i32 = arith.constant 128 : i32
    %19 = arith.muli %c0_i32, %c128_i32 : i32
    %20 = tpu.assume_multiple %19, 128 : i32
    %21 = arith.index_cast %20 : i32 to index
    %c0_8 = arith.constant 0 : index
    %22 = vector.load %arg0[%21, %c0_8] : memref<256x5xf32, #tpu.memory_space<vmem>>, vector<128x5xf32>
    %23 = vector.extract_strided_slice %22 {offsets = [0, 0], sizes = [128, 1], strides = [1, 1]} : vector<128x5xf32> to vector<128x1xf32>
    %24 = vector.extract_strided_slice %22 {offsets = [0, 1], sizes = [128, 1], strides = [1, 1]} : vector<128x5xf32> to vector<128x1xf32>
    %25 = vector.broadcast %24 : vector<128x1xf32> to vector<128x128xf32>
    %26 = vector.broadcast %1 : vector<1x128xf32> to vector<128x128xf32>
    %27 = arith.mulf %25, %26 : vector<128x128xf32>
    %28 = vector.extract_strided_slice %22 {offsets = [0, 2], sizes = [128, 1], strides = [1, 1]} : vector<128x5xf32> to vector<128x1xf32>
    %29 = vector.broadcast %28 : vector<128x1xf32> to vector<128x128xf32>
    %30 = vector.broadcast %2 : vector<1x128xf32> to vector<128x128xf32>
    %31 = arith.mulf %29, %30 : vector<128x128xf32>
    %32 = arith.addf %27, %31 : vector<128x128xf32>
    %33 = vector.extract_strided_slice %22 {offsets = [0, 3], sizes = [128, 1], strides = [1, 1]} : vector<128x5xf32> to vector<128x1xf32>
    %34 = vector.broadcast %33 : vector<128x1xf32> to vector<128x128xf32>
    %35 = vector.broadcast %3 : vector<1x128xf32> to vector<128x128xf32>
    %36 = arith.mulf %34, %35 : vector<128x128xf32>
    %37 = arith.addf %32, %36 : vector<128x128xf32>
    %38 = vector.extract_strided_slice %22 {offsets = [0, 4], sizes = [128, 1], strides = [1, 1]} : vector<128x5xf32> to vector<128x1xf32>
    %39 = vector.broadcast %38 : vector<128x1xf32> to vector<128x128xf32>
    %40 = vector.broadcast %4 : vector<1x128xf32> to vector<128x128xf32>
    %41 = arith.mulf %39, %40 : vector<128x128xf32>
    %42 = arith.addf %37, %41 : vector<128x128xf32>
    %43 = vector.broadcast %5 : vector<1x128xf32> to vector<128x128xf32>
    %44 = arith.addf %42, %43 : vector<128x128xf32>
    %cst_9 = arith.constant 0.000000e+00 : f32
    %45 = vector.broadcast %cst_9 : f32 to vector<128x128xf32>
    %46 = arith.maximumf %44, %45 : vector<128x128xf32>
    %47 = arith.truncf %46 : vector<128x128xf32> to vector<128x128xbf16>
    %cst_10 = arith.constant dense<0.000000e+00> : vector<128x128xf32>
    %48 = tpu.matmul %47, %12, %cst_10 {dimension_numbers = #tpu.dot_dimension_numbers<[1], [0], [0], [1], [0, 0, 1, 1], [], []>} : vector<128x128xbf16>, vector<128x128xbf16>, vector<128x128xf32> -> vector<128x128xf32>
    %49 = vector.broadcast %6 : vector<1x128xf32> to vector<128x128xf32>
    %50 = arith.addf %48, %49 : vector<128x128xf32>
    %cst_11 = arith.constant 0.000000e+00 : f32
    %51 = vector.broadcast %cst_11 : f32 to vector<128x128xf32>
    %52 = arith.maximumf %50, %51 : vector<128x128xf32>
    %53 = arith.truncf %52 : vector<128x128xf32> to vector<128x128xbf16>
    %cst_12 = arith.constant dense<0.000000e+00> : vector<128x128xf32>
    %54 = tpu.matmul %53, %13, %cst_12 {dimension_numbers = #tpu.dot_dimension_numbers<[1], [0], [0], [1], [0, 0, 1, 1], [], []>} : vector<128x128xbf16>, vector<128x128xbf16>, vector<128x128xf32> -> vector<128x128xf32>
    %55 = vector.broadcast %7 : vector<1x128xf32> to vector<128x128xf32>
    %56 = arith.addf %54, %55 : vector<128x128xf32>
    %57 = arith.addf %46, %56 : vector<128x128xf32>
    %cst_13 = arith.constant 0.000000e+00 : f32
    %58 = vector.broadcast %cst_13 : f32 to vector<128x128xf32>
    %59 = arith.maximumf %57, %58 : vector<128x128xf32>
    %60 = arith.truncf %59 : vector<128x128xf32> to vector<128x128xbf16>
    %cst_14 = arith.constant dense<0.000000e+00> : vector<128x128xf32>
    %61 = tpu.matmul %60, %14, %cst_14 {dimension_numbers = #tpu.dot_dimension_numbers<[1], [0], [0], [1], [0, 0, 1, 1], [], []>} : vector<128x128xbf16>, vector<128x128xbf16>, vector<128x128xf32> -> vector<128x128xf32>
    %62 = vector.broadcast %8 : vector<1x128xf32> to vector<128x128xf32>
    %63 = arith.addf %61, %62 : vector<128x128xf32>
    %cst_15 = arith.constant 0.000000e+00 : f32
    %64 = vector.broadcast %cst_15 : f32 to vector<128x128xf32>
    %65 = arith.maximumf %63, %64 : vector<128x128xf32>
    %66 = arith.truncf %65 : vector<128x128xf32> to vector<128x128xbf16>
    %cst_16 = arith.constant dense<0.000000e+00> : vector<128x128xf32>
    %67 = tpu.matmul %66, %15, %cst_16 {dimension_numbers = #tpu.dot_dimension_numbers<[1], [0], [0], [1], [0, 0, 1, 1], [], []>} : vector<128x128xbf16>, vector<128x128xbf16>, vector<128x128xf32> -> vector<128x128xf32>
    %68 = vector.broadcast %9 : vector<1x128xf32> to vector<128x128xf32>
    %69 = arith.addf %67, %68 : vector<128x128xf32>
    %70 = arith.addf %59, %69 : vector<128x128xf32>
    %cst_17 = arith.constant 0.000000e+00 : f32
    %71 = vector.broadcast %cst_17 : f32 to vector<128x128xf32>
    %72 = arith.maximumf %70, %71 : vector<128x128xf32>
    %73 = vector.broadcast %11 : vector<1x128xf32> to vector<128x128xf32>
    %74 = arith.addf %72, %73 : vector<128x128xf32>
    %cst_18 = arith.constant 0.000000e+00 : f32
    %75 = vector.broadcast %cst_18 : f32 to vector<128x1xf32>
    %76 = arith.cmpf oeq, %23, %75 : vector<128x1xf32>
    %cst_19 = arith.constant 0.000000e+00 : f32
    %77 = vector.shape_cast %76 : vector<128x1xi1> to vector<128x1xi1>
    %78 = vector.broadcast %77 : vector<128x1xi1> to vector<128x128xi1>
    %79 = vector.broadcast %cst_19 : f32 to vector<128x128xf32>
    %80 = arith.select %78, %74, %79 : vector<128x128xi1>, vector<128x128xf32>
    %cst_20 = arith.constant dense<0.000000e+00> : vector<128xf32>
    %81 = vector.multi_reduction <add>, %80, %cst_20 [0] : vector<128x128xf32> to vector<128xf32>
    %82 = vector.shape_cast %81 : vector<128xf32> to vector<1x128xf32>
    %83 = arith.addf %17, %82 : vector<1x128xf32>
    %cst_21 = arith.constant 1.000000e+00 : f32
    %84 = vector.broadcast %cst_21 : f32 to vector<128x1xf32>
    %85 = arith.cmpf oeq, %23, %84 : vector<128x1xf32>
    %cst_22 = arith.constant 0.000000e+00 : f32
    %86 = vector.shape_cast %85 : vector<128x1xi1> to vector<128x1xi1>
    %87 = vector.broadcast %86 : vector<128x1xi1> to vector<128x128xi1>
    %88 = vector.broadcast %cst_22 : f32 to vector<128x128xf32>
    %89 = arith.select %87, %74, %88 : vector<128x128xi1>, vector<128x128xf32>
    %cst_23 = arith.constant dense<0.000000e+00> : vector<128xf32>
    %90 = vector.multi_reduction <add>, %89, %cst_23 [0] : vector<128x128xf32> to vector<128xf32>
    %91 = vector.shape_cast %90 : vector<128xf32> to vector<1x128xf32>
    %92 = arith.addf %18, %91 : vector<1x128xf32>
    %c1_i32 = arith.constant 1 : i32
    %c128_i32_24 = arith.constant 128 : i32
    %93 = arith.muli %c1_i32, %c128_i32_24 : i32
    %94 = tpu.assume_multiple %93, 128 : i32
    %95 = arith.index_cast %94 : i32 to index
    %c0_25 = arith.constant 0 : index
    %96 = vector.load %arg0[%95, %c0_25] : memref<256x5xf32, #tpu.memory_space<vmem>>, vector<128x5xf32>
    %97 = vector.extract_strided_slice %96 {offsets = [0, 0], sizes = [128, 1], strides = [1, 1]} : vector<128x5xf32> to vector<128x1xf32>
    %98 = vector.extract_strided_slice %96 {offsets = [0, 1], sizes = [128, 1], strides = [1, 1]} : vector<128x5xf32> to vector<128x1xf32>
    %99 = vector.broadcast %98 : vector<128x1xf32> to vector<128x128xf32>
    %100 = vector.broadcast %1 : vector<1x128xf32> to vector<128x128xf32>
    %101 = arith.mulf %99, %100 : vector<128x128xf32>
    %102 = vector.extract_strided_slice %96 {offsets = [0, 2], sizes = [128, 1], strides = [1, 1]} : vector<128x5xf32> to vector<128x1xf32>
    %103 = vector.broadcast %102 : vector<128x1xf32> to vector<128x128xf32>
    %104 = vector.broadcast %2 : vector<1x128xf32> to vector<128x128xf32>
    %105 = arith.mulf %103, %104 : vector<128x128xf32>
    %106 = arith.addf %101, %105 : vector<128x128xf32>
    %107 = vector.extract_strided_slice %96 {offsets = [0, 3], sizes = [128, 1], strides = [1, 1]} : vector<128x5xf32> to vector<128x1xf32>
    %108 = vector.broadcast %107 : vector<128x1xf32> to vector<128x128xf32>
    %109 = vector.broadcast %3 : vector<1x128xf32> to vector<128x128xf32>
    %110 = arith.mulf %108, %109 : vector<128x128xf32>
    %111 = arith.addf %106, %110 : vector<128x128xf32>
    %112 = vector.extract_strided_slice %96 {offsets = [0, 4], sizes = [128, 1], strides = [1, 1]} : vector<128x5xf32> to vector<128x1xf32>
    %113 = vector.broadcast %112 : vector<128x1xf32> to vector<128x128xf32>
    %114 = vector.broadcast %4 : vector<1x128xf32> to vector<128x128xf32>
    %115 = arith.mulf %113, %114 : vector<128x128xf32>
    %116 = arith.addf %111, %115 : vector<128x128xf32>
    %117 = vector.broadcast %5 : vector<1x128xf32> to vector<128x128xf32>
    %118 = arith.addf %116, %117 : vector<128x128xf32>
    %cst_26 = arith.constant 0.000000e+00 : f32
    %119 = vector.broadcast %cst_26 : f32 to vector<128x128xf32>
    %120 = arith.maximumf %118, %119 : vector<128x128xf32>
    %121 = arith.truncf %120 : vector<128x128xf32> to vector<128x128xbf16>
    %cst_27 = arith.constant dense<0.000000e+00> : vector<128x128xf32>
    %122 = tpu.matmul %121, %12, %cst_27 {dimension_numbers = #tpu.dot_dimension_numbers<[1], [0], [0], [1], [0, 0, 1, 1], [], []>} : vector<128x128xbf16>, vector<128x128xbf16>, vector<128x128xf32> -> vector<128x128xf32>
    %123 = vector.broadcast %6 : vector<1x128xf32> to vector<128x128xf32>
    %124 = arith.addf %122, %123 : vector<128x128xf32>
    %cst_28 = arith.constant 0.000000e+00 : f32
    %125 = vector.broadcast %cst_28 : f32 to vector<128x128xf32>
    %126 = arith.maximumf %124, %125 : vector<128x128xf32>
    %127 = arith.truncf %126 : vector<128x128xf32> to vector<128x128xbf16>
    %cst_29 = arith.constant dense<0.000000e+00> : vector<128x128xf32>
    %128 = tpu.matmul %127, %13, %cst_29 {dimension_numbers = #tpu.dot_dimension_numbers<[1], [0], [0], [1], [0, 0, 1, 1], [], []>} : vector<128x128xbf16>, vector<128x128xbf16>, vector<128x128xf32> -> vector<128x128xf32>
    %129 = vector.broadcast %7 : vector<1x128xf32> to vector<128x128xf32>
    %130 = arith.addf %128, %129 : vector<128x128xf32>
    %131 = arith.addf %120, %130 : vector<128x128xf32>
    %cst_30 = arith.constant 0.000000e+00 : f32
    %132 = vector.broadcast %cst_30 : f32 to vector<128x128xf32>
    %133 = arith.maximumf %131, %132 : vector<128x128xf32>
    %134 = arith.truncf %133 : vector<128x128xf32> to vector<128x128xbf16>
    %cst_31 = arith.constant dense<0.000000e+00> : vector<128x128xf32>
    %135 = tpu.matmul %134, %14, %cst_31 {dimension_numbers = #tpu.dot_dimension_numbers<[1], [0], [0], [1], [0, 0, 1, 1], [], []>} : vector<128x128xbf16>, vector<128x128xbf16>, vector<128x128xf32> -> vector<128x128xf32>
    %136 = vector.broadcast %8 : vector<1x128xf32> to vector<128x128xf32>
    %137 = arith.addf %135, %136 : vector<128x128xf32>
    %cst_32 = arith.constant 0.000000e+00 : f32
    %138 = vector.broadcast %cst_32 : f32 to vector<128x128xf32>
    %139 = arith.maximumf %137, %138 : vector<128x128xf32>
    %140 = arith.truncf %139 : vector<128x128xf32> to vector<128x128xbf16>
    %cst_33 = arith.constant dense<0.000000e+00> : vector<128x128xf32>
    %141 = tpu.matmul %140, %15, %cst_33 {dimension_numbers = #tpu.dot_dimension_numbers<[1], [0], [0], [1], [0, 0, 1, 1], [], []>} : vector<128x128xbf16>, vector<128x128xbf16>, vector<128x128xf32> -> vector<128x128xf32>
    %142 = vector.broadcast %9 : vector<1x128xf32> to vector<128x128xf32>
    %143 = arith.addf %141, %142 : vector<128x128xf32>
    %144 = arith.addf %133, %143 : vector<128x128xf32>
    %cst_34 = arith.constant 0.000000e+00 : f32
    %145 = vector.broadcast %cst_34 : f32 to vector<128x128xf32>
    %146 = arith.maximumf %144, %145 : vector<128x128xf32>
    %147 = vector.broadcast %11 : vector<1x128xf32> to vector<128x128xf32>
    %148 = arith.addf %146, %147 : vector<128x128xf32>
    %cst_35 = arith.constant 0.000000e+00 : f32
    %149 = vector.broadcast %cst_35 : f32 to vector<128x1xf32>
    %150 = arith.cmpf oeq, %97, %149 : vector<128x1xf32>
    %cst_36 = arith.constant 0.000000e+00 : f32
    %151 = vector.shape_cast %150 : vector<128x1xi1> to vector<128x1xi1>
    %152 = vector.broadcast %151 : vector<128x1xi1> to vector<128x128xi1>
    %153 = vector.broadcast %cst_36 : f32 to vector<128x128xf32>
    %154 = arith.select %152, %148, %153 : vector<128x128xi1>, vector<128x128xf32>
    %cst_37 = arith.constant dense<0.000000e+00> : vector<128xf32>
    %155 = vector.multi_reduction <add>, %154, %cst_37 [0] : vector<128x128xf32> to vector<128xf32>
    %156 = vector.shape_cast %155 : vector<128xf32> to vector<1x128xf32>
    %157 = arith.addf %83, %156 : vector<1x128xf32>
    %cst_38 = arith.constant 1.000000e+00 : f32
    %158 = vector.broadcast %cst_38 : f32 to vector<128x1xf32>
    %159 = arith.cmpf oeq, %97, %158 : vector<128x1xf32>
    %cst_39 = arith.constant 0.000000e+00 : f32
    %160 = vector.shape_cast %159 : vector<128x1xi1> to vector<128x1xi1>
    %161 = vector.broadcast %160 : vector<128x1xi1> to vector<128x128xi1>
    %162 = vector.broadcast %cst_39 : f32 to vector<128x128xf32>
    %163 = arith.select %161, %148, %162 : vector<128x128xi1>, vector<128x128xf32>
    %cst_40 = arith.constant dense<0.000000e+00> : vector<128xf32>
    %164 = vector.multi_reduction <add>, %163, %cst_40 [0] : vector<128x128xf32> to vector<128xf32>
    %165 = vector.shape_cast %164 : vector<128xf32> to vector<1x128xf32>
    %166 = arith.addf %92, %165 : vector<1x128xf32>
    %c2_i32 = arith.constant 2 : i32
    %167 = tpu.concatenate %157, %166 in 0 : vector<1x128xf32>, vector<1x128xf32> -> vector<2x128xf32>
    %168 = vector.extract_strided_slice %167 {offsets = [0, 32], sizes = [2, 1], strides = [1, 1]} : vector<2x128xf32> to vector<2x1xf32>
    %cst_41 = arith.constant 1.000000e+00 : f32
    %169 = vector.broadcast %cst_41 : f32 to vector<2x1xf32>
    %170 = arith.maximumf %168, %169 : vector<2x1xf32>
    %171 = tpu.reciprocal %170 : vector<2x1xf32> -> vector<2x1xf32>
    %172 = vector.broadcast %171 : vector<2x1xf32> to vector<2x128xf32>
    %173 = arith.mulf %167, %172 : vector<2x128xf32>
    %174 = arith.truncf %173 : vector<2x128xf32> to vector<2x128xbf16>
    %cst_42 = arith.constant dense<0.000000e+00> : vector<2x128xf32>
    %175 = tpu.matmul %174, %16, %cst_42 {dimension_numbers = #tpu.dot_dimension_numbers<[1], [0], [0], [1], [0, 0, 1, 1], [], []>} : vector<2x128xbf16>, vector<128x128xbf16>, vector<2x128xf32> -> vector<2x128xf32>
    %176 = vector.broadcast %10 : vector<1x128xf32> to vector<2x128xf32>
    %177 = arith.addf %175, %176 : vector<2x128xf32>
    %c0_43 = arith.constant 0 : index
    %c0_44 = arith.constant 0 : index
    %178 = vector.load %arg3[%c0_43, %c0_44] : memref<2x128xf32, #tpu.memory_space<vmem>>, vector<2x128xf32>
    tpu.vector_store %arg3[%c0_43, %c0_44], %177 {strides = array<i32>} : memref<2x128xf32, #tpu.memory_space<vmem>>, vector<2x128xf32>,
    return
  }
}

</mosaic_0001>

<llo_original>
// kernel: _forward.1
$region0: #{_forward.1}
  #allocation0 [shape = 'u32[]', space=smem, size = 0x4, offset = 0x4, fixed_abs, tag = 'smem constant byte address 0x4 - core index']
  #allocation1 [shape = 'u32[144,128]{1,0:T(1,128)}', space=vmem, size = 0x12000, scoped, tag = 'internal scratch']
  %s0 = inlined_call_operand.vmem [shape: f32[256,5], index: 0, kind: input, shape index: {}]
  %s1 = inlined_call_operand.vmem [shape: f32[16,128], index: 1, kind: input, shape index: {}]
  %s2 = inlined_call_operand.hbm [shape: bf16[640,128], index: 2, kind: input, shape index: {}]
  %s3 = inlined_call_operand.hbm [shape: f32[2,128], index: 3, kind: output, shape index: {}]
  %s4 = sld [smem:[#allocation0]]
  $region26: #{_forward.1} parent=0
    _
  %s6 = ssub.s32 1, %s4
  %s7 = scalar_select 0, %s6, %s4
  $region1: #{_forward.1} parent=0
    #allocation2 [shape = 'u8[163840]{0}', space=vmem, size = 0x28000, scoped, tag = 'input window, operand 2, single buffered']
    #allocation3 [shape = 's32[1]{0}', space=sflag, size = 0x4, scoped, tag = 'scoped memory for _forward.1']
    #allocation4 [shape = 's32[1]{0}', space=sflag, size = 0x4, scoped, tag = 'scoped memory for _forward.1']
    #allocation5 [shape = 'u8[1024]{0}', space=vmem, size = 0x400, scoped, tag = 'output window, operand 0, single buffered']
    %8 = vsyncpa [#allocation3], 0
    %9 = vsyncpa [#allocation4], 0
    // Predicated region
    $region2: #{_forward.1} parent=1 // pred_check
      _
    $region3: #{_forward.1} parent=1 // pred_check_branch
      %11 = sbr.rel (0) target = $region5
    $region4: #{_forward.1} parent=1 // pred_region
      _
    $region5: #{_forward.1} parent=1 // pred_fallthru
      _
    // Predicated region
    $region6: #{_forward.1} parent=1 // pred_check
      _
    $region7: #{_forward.1} parent=1 // pred_check_branch
      %13 = sbr.rel (0) target = $region9
    $region8: #{_forward.1} parent=1 // pred_region
      _
    $region9: #{_forward.1} parent=1 // pred_fallthru
      _
    // Predicated region
    $region10: #{_forward.1} parent=1 // pred_check
      _
    $region11: #{_forward.1} parent=1 // pred_check_branch
      %15 = sbr.rel (0) target = $region13
    $region12: #{_forward.1} parent=1 // pred_region
      %s17 = ssub.s32 5120, 5120
      %18 = vsyncadd [#allocation3], %s17
      %s19 = sshll.u32 [#allocation2], 4
      %s20 = int_to_ptr.vmem [resolvable:$true] %s19
      %25 = dma.hbm_to_vmem [thread:$0]  %s2, 5120, %s20, [#allocation3], 64, 64, 4
    $region13: #{_forward.1} parent=1 // pred_fallthru
      _
    // Predicated region
    $region14: #{_forward.1} parent=1 // pred_check
      _
    $region15: #{_forward.1} parent=1 // pred_check_branch
      %27 = sbr.rel (0) target = $region17
    $region16: #{_forward.1} parent=1 // pred_region
      %28 = dma.done [#allocation3], 5120
    $region17: #{_forward.1} parent=1 // pred_fallthru
      _
    %v30 = vld [vmem:[%s1] sm:$0xff]
    %v31 = vld [vmem:[%s1 + $0x8] sm:$0xff]
    %v32 = vld [vmem:[#allocation2] sm:$0xf]
    %v33 = vld [vmem:[#allocation2 + $0x4] sm:$0xf]
    %v34 = vld [vmem:[#allocation2 + $0x8] sm:$0xf]
    %v35 = vld [vmem:[#allocation2 + $0xc] sm:$0xf]
    %v36 = vld [vmem:[#allocation2 + $0x10] sm:$0xf]
    %v37 = vld [vmem:[#allocation2 + $0x14] sm:$0xf]
    %v38 = vld [vmem:[#allocation2 + $0x18] sm:$0xf]
    %v39 = vld [vmem:[#allocation2 + $0x1c] sm:$0xf]
    %v40 = vld [vmem:[#allocation2 + $0x20] sm:$0xf]
    %v41 = vld [vmem:[#allocation2 + $0x24] sm:$0xf]
    %v42 = vld [vmem:[#allocation2 + $0x28] sm:$0xf]
    %v43 = vld [vmem:[#allocation2 + $0x2c] sm:$0xf]
    %v44 = vld [vmem:[#allocation2 + $0x30] sm:$0xf]
    %v45 = vld [vmem:[#allocation2 + $0x34] sm:$0xf]
    %v46 = vld [vmem:[#allocation2 + $0x38] sm:$0xf]
    %v47 = vld [vmem:[#allocation2 + $0x3c] sm:$0xf]
    %v48 = vld [vmem:[#allocation2 + $0x40] sm:$0xf]
    %v49 = vld [vmem:[#allocation2 + $0x44] sm:$0xf]
    %v50 = vld [vmem:[#allocation2 + $0x48] sm:$0xf]
    %v51 = vld [vmem:[#allocation2 + $0x4c] sm:$0xf]
    %v52 = vld [vmem:[#allocation2 + $0x50] sm:$0xf]
    %v53 = vld [vmem:[#allocation2 + $0x54] sm:$0xf]
    %v54 = vld [vmem:[#allocation2 + $0x58] sm:$0xf]
    %v55 = vld [vmem:[#allocation2 + $0x5c] sm:$0xf]
    %v56 = vld [vmem:[#allocation2 + $0x60] sm:$0xf]
    %v57 = vld [vmem:[#allocation2 + $0x64] sm:$0xf]
    %v58 = vld [vmem:[#allocation2 + $0x68] sm:$0xf]
    %v59 = vld [vmem:[#allocation2 + $0x6c] sm:$0xf]
    %v60 = vld [vmem:[#allocation2 + $0x70] sm:$0xf]
    %v61 = vld [vmem:[#allocation2 + $0x74] sm:$0xf]
    %v62 = vld [vmem:[#allocation2 + $0x78] sm:$0xf]
    %v63 = vld [vmem:[#allocation2 + $0x7c] sm:$0xf]
    %v64 = vld [vmem:[#allocation2 + $0x80] sm:$0xf]
    %v65 = vld [vmem:[#allocation2 + $0x84] sm:$0xf]
    %v66 = vld [vmem:[#allocation2 + $0x88] sm:$0xf]
    %v67 = vld [vmem:[#allocation2 + $0x8c] sm:$0xf]
    %v68 = vld [vmem:[#allocation2 + $0x90] sm:$0xf]
    %v69 = vld [vmem:[#allocation2 + $0x94] sm:$0xf]
    %v70 = vld [vmem:[#allocation2 + $0x98] sm:$0xf]
    %v71 = vld [vmem:[#allocation2 + $0x9c] sm:$0xf]
    %v72 = vld [vmem:[#allocation2 + $0xa0] sm:$0xf]
    %v73 = vld [vmem:[#allocation2 + $0xa4] sm:$0xf]
    %v74 = vld [vmem:[#allocation2 + $0xa8] sm:$0xf]
    %v75 = vld [vmem:[#allocation2 + $0xac] sm:$0xf]
    %v76 = vld [vmem:[#allocation2 + $0xb0] sm:$0xf]
    %v77 = vld [vmem:[#allocation2 + $0xb4] sm:$0xf]
    %v78 = vld [vmem:[#allocation2 + $0xb8] sm:$0xf]
    %v79 = vld [vmem:[#allocation2 + $0xbc] sm:$0xf]
    %v80 = vld [vmem:[#allocation2 + $0xc0] sm:$0xf]
    %v81 = vld [vmem:[#allocation2 + $0xc4] sm:$0xf]
    %v82 = vld [vmem:[#allocation2 + $0xc8] sm:$0xf]
    %v83 = vld [vmem:[#allocation2 + $0xcc] sm:$0xf]
    %v84 = vld [vmem:[#allocation2 + $0xd0] sm:$0xf]
    %v85 = vld [vmem:[#allocation2 + $0xd4] sm:$0xf]
    %v86 = vld [vmem:[#allocation2 + $0xd8] sm:$0xf]
    %v87 = vld [vmem:[#allocation2 + $0xdc] sm:$0xf]
    %v88 = vld [vmem:[#allocation2 + $0xe0] sm:$0xf]
    %v89 = vld [vmem:[#allocation2 + $0xe4] sm:$0xf]
    %v90 = vld [vmem:[#allocation2 + $0xe8] sm:$0xf]
    %v91 = vld [vmem:[#allocation2 + $0xec] sm:$0xf]
    %v92 = vld [vmem:[#allocation2 + $0xf0] sm:$0xf]
    %v93 = vld [vmem:[#allocation2 + $0xf4] sm:$0xf]
    %v94 = vld [vmem:[#allocation2 + $0xf8] sm:$0xf]
    %v95 = vld [vmem:[#allocation2 + $0xfc] sm:$0xf]
    %v96 = vld [vmem:[#allocation2 + $0x100] sm:$0xf]
    %v97 = vld [vmem:[#allocation2 + $0x104] sm:$0xf]
    %v98 = vld [vmem:[#allocation2 + $0x108] sm:$0xf]
    %v99 = vld [vmem:[#allocation2 + $0x10c] sm:$0xf]
    %v100 = vld [vmem:[#allocation2 + $0x110] sm:$0xf]
    %v101 = vld [vmem:[#allocation2 + $0x114] sm:$0xf]
    %v102 = vld [vmem:[#allocation2 + $0x118] sm:$0xf]
    %v103 = vld [vmem:[#allocation2 + $0x11c] sm:$0xf]
    %v104 = vld [vmem:[#allocation2 + $0x120] sm:$0xf]
    %v105 = vld [vmem:[#allocation2 + $0x124] sm:$0xf]
    %v106 = vld [vmem:[#allocation2 + $0x128] sm:$0xf]
    %v107 = vld [vmem:[#allocation2 + $0x12c] sm:$0xf]
    %v108 = vld [vmem:[#allocation2 + $0x130] sm:$0xf]
    %v109 = vld [vmem:[#allocation2 + $0x134] sm:$0xf]
    %v110 = vld [vmem:[#allocation2 + $0x138] sm:$0xf]
    %v111 = vld [vmem:[#allocation2 + $0x13c] sm:$0xf]
    %v112 = vld [vmem:[%s0] sm:$0xff]
    %v113 = vld [vmem:[%s0 + $0x8] sm:$0xff]
    %v114 = vld [vmem:[%s0 + $0x10] sm:$0xff]
    %v115 = vld [vmem:[%s0 + $0x18] sm:$0xff]
    %v116 = vld [vmem:[%s0 + $0x20] sm:$0xff]
    %v117 = vld [vmem:[%s0 + $0x28] sm:$0xff]
    %v118 = vld [vmem:[%s0 + $0x30] sm:$0xff]
    %v119 = vld [vmem:[%s0 + $0x38] sm:$0xff]
    %v120 = vld [vmem:[%s0 + $0x40] sm:$0xff]
    %v121 = vld [vmem:[%s0 + $0x48] sm:$0xff]
    %v122 = vld [vmem:[%s0 + $0x50] sm:$0xff]
    %v123 = vld [vmem:[%s0 + $0x58] sm:$0xff]
    %v124 = vld [vmem:[%s0 + $0x60] sm:$0xff]
    %v125 = vld [vmem:[%s0 + $0x68] sm:$0xff]
    %v126 = vld [vmem:[%s0 + $0x70] sm:$0xff]
    %v127 = vld [vmem:[%s0 + $0x78] sm:$0xff]
    %129 = vset.pattern.permute.xlu0 1
    %130 = vperm.xlu0 %129, %v112
    %v131 = vpop.permute.xlu0 %130
    %134 = vset.pattern.permute.xlu0 1
    %135 = vperm.xlu0 %134, %v113
    %v136 = vpop.permute.xlu0 %135
    %139 = vset.pattern.permute.xlu0 1
    %140 = vperm.xlu0 %139, %v114
    %v141 = vpop.permute.xlu0 %140
    %144 = vset.pattern.permute.xlu0 1
    %145 = vperm.xlu0 %144, %v115
    %v146 = vpop.permute.xlu0 %145
    %149 = vset.pattern.permute.xlu0 1
    %150 = vperm.xlu0 %149, %v116
    %v151 = vpop.permute.xlu0 %150
    %154 = vset.pattern.permute.xlu0 1
    %155 = vperm.xlu0 %154, %v117
    %v156 = vpop.permute.xlu0 %155
    %159 = vset.pattern.permute.xlu0 1
    %160 = vperm.xlu0 %159, %v118
    %v161 = vpop.permute.xlu0 %160
    %164 = vset.pattern.permute.xlu0 1
    %165 = vperm.xlu0 %164, %v119
    %v166 = vpop.permute.xlu0 %165
    %169 = vset.pattern.permute.xlu0 1
    %170 = vperm.xlu0 %169, %v120
    %v171 = vpop.permute.xlu0 %170
    %174 = vset.pattern.permute.xlu0 1
    %175 = vperm.xlu0 %174, %v121
    %v176 = vpop.permute.xlu0 %175
    %179 = vset.pattern.permute.xlu0 1
    %180 = vperm.xlu0 %179, %v122
    %v181 = vpop.permute.xlu0 %180
    %184 = vset.pattern.permute.xlu0 1
    %185 = vperm.xlu0 %184, %v123
    %v186 = vpop.permute.xlu0 %185
    %189 = vset.pattern.permute.xlu0 1
    %190 = vperm.xlu0 %189, %v124
    %v191 = vpop.permute.xlu0 %190
    %194 = vset.pattern.permute.xlu0 1
    %195 = vperm.xlu0 %194, %v125
    %v196 = vpop.permute.xlu0 %195
    %199 = vset.pattern.permute.xlu0 1
    %200 = vperm.xlu0 %199, %v126
    %v201 = vpop.permute.xlu0 %200
    %204 = vset.pattern.permute.xlu0 1
    %205 = vperm.xlu0 %204, %v127
    %v206 = vpop.permute.xlu0 %205
    %v208 = vlaneseq
    %v209 = vshrl.u32 %v208, 7
    %v210 = vsub.s32 0, %v209
    %v211 = vrot.slane %v30, %v210
    %v212 = vmul.f32 %v131, %v211
    %v213 = vmul.f32 %v136, %v211
    %v214 = vmul.f32 %v141, %v211
    %v215 = vmul.f32 %v146, %v211
    %v216 = vmul.f32 %v151, %v211
    %v217 = vmul.f32 %v156, %v211
    %v218 = vmul.f32 %v161, %v211
    %v219 = vmul.f32 %v166, %v211
    %v220 = vmul.f32 %v171, %v211
    %v221 = vmul.f32 %v176, %v211
    %v222 = vmul.f32 %v181, %v211
    %v223 = vmul.f32 %v186, %v211
    %v224 = vmul.f32 %v191, %v211
    %v225 = vmul.f32 %v196, %v211
    %v226 = vmul.f32 %v201, %v211
    %v227 = vmul.f32 %v206, %v211
    %228 = vset.pattern.permute.xlu0 2
    %229 = vperm.xlu0 %228, %v112
    %v230 = vpop.permute.xlu0 %229
    %232 = vset.pattern.permute.xlu0 2
    %233 = vperm.xlu0 %232, %v113
    %v234 = vpop.permute.xlu0 %233
    %236 = vset.pattern.permute.xlu0 2
    %237 = vperm.xlu0 %236, %v114
    %v238 = vpop.permute.xlu0 %237
    %240 = vset.pattern.permute.xlu0 2
    %241 = vperm.xlu0 %240, %v115
    %v242 = vpop.permute.xlu0 %241
    %244 = vset.pattern.permute.xlu0 2
    %245 = vperm.xlu0 %244, %v116
    %v246 = vpop.permute.xlu0 %245
    %248 = vset.pattern.permute.xlu0 2
    %249 = vperm.xlu0 %248, %v117
    %v250 = vpop.permute.xlu0 %249
    %252 = vset.pattern.permute.xlu0 2
    %253 = vperm.xlu0 %252, %v118
    %v254 = vpop.permute.xlu0 %253
    %256 = vset.pattern.permute.xlu0 2
    %257 = vperm.xlu0 %256, %v119
    %v258 = vpop.permute.xlu0 %257
    %260 = vset.pattern.permute.xlu0 2
    %261 = vperm.xlu0 %260, %v120
    %v262 = vpop.permute.xlu0 %261
    %264 = vset.pattern.permute.xlu0 2
    %265 = vperm.xlu0 %264, %v121
    %v266 = vpop.permute.xlu0 %265
    %268 = vset.pattern.permute.xlu0 2
    %269 = vperm.xlu0 %268, %v122
    %v270 = vpop.permute.xlu0 %269
    %272 = vset.pattern.permute.xlu0 2
    %273 = vperm.xlu0 %272, %v123
    %v274 = vpop.permute.xlu0 %273
    %276 = vset.pattern.permute.xlu0 2
    %277 = vperm.xlu0 %276, %v124
    %v278 = vpop.permute.xlu0 %277
    %280 = vset.pattern.permute.xlu0 2
    %281 = vperm.xlu0 %280, %v125
    %v282 = vpop.permute.xlu0 %281
    %284 = vset.pattern.permute.xlu0 2
    %285 = vperm.xlu0 %284, %v126
    %v286 = vpop.permute.xlu0 %285
    %288 = vset.pattern.permute.xlu0 2
    %289 = vperm.xlu0 %288, %v127
    %v290 = vpop.permute.xlu0 %289
    %v292 = vlaneseq
    %v293 = vshrl.u32 %v292, 7
    %v294 = vsub.s32 1, %v293
    %v295 = vrot.slane %v30, %v294
    %v296 = vmul.f32 %v230, %v295
    %v297 = vmul.f32 %v234, %v295
    %v298 = vmul.f32 %v238, %v295
    %v299 = vmul.f32 %v242, %v295
    %v300 = vmul.f32 %v246, %v295
    %v301 = vmul.f32 %v250, %v295
    %v302 = vmul.f32 %v254, %v295
    %v303 = vmul.f32 %v258, %v295
    %v304 = vmul.f32 %v262, %v295
    %v305 = vmul.f32 %v266, %v295
    %v306 = vmul.f32 %v270, %v295
    %v307 = vmul.f32 %v274, %v295
    %v308 = vmul.f32 %v278, %v295
    %v309 = vmul.f32 %v282, %v295
    %v310 = vmul.f32 %v286, %v295
    %v311 = vmul.f32 %v290, %v295
    %v312 = vadd.f32 %v212, %v296
    %v313 = vadd.f32 %v213, %v297
    %v314 = vadd.f32 %v214, %v298
    %v315 = vadd.f32 %v215, %v299
    %v316 = vadd.f32 %v216, %v300
    %v317 = vadd.f32 %v217, %v301
    %v318 = vadd.f32 %v218, %v302
    %v319 = vadd.f32 %v219, %v303
    %v320 = vadd.f32 %v220, %v304
    %v321 = vadd.f32 %v221, %v305
    %v322 = vadd.f32 %v222, %v306
    %v323 = vadd.f32 %v223, %v307
    %v324 = vadd.f32 %v224, %v308
    %v325 = vadd.f32 %v225, %v309
    %v326 = vadd.f32 %v226, %v310
    %v327 = vadd.f32 %v227, %v311
    %328 = vset.pattern.permute.xlu0 3
    %329 = vperm.xlu0 %328, %v112
    %v330 = vpop.permute.xlu0 %329
    %332 = vset.pattern.permute.xlu0 3
    %333 = vperm.xlu0 %332, %v113
    %v334 = vpop.permute.xlu0 %333
    %336 = vset.pattern.permute.xlu0 3
    %337 = vperm.xlu0 %336, %v114
    %v338 = vpop.permute.xlu0 %337
    %340 = vset.pattern.permute.xlu0 3
    %341 = vperm.xlu0 %340, %v115
    %v342 = vpop.permute.xlu0 %341
    %344 = vset.pattern.permute.xlu0 3
    %345 = vperm.xlu0 %344, %v116
    %v346 = vpop.permute.xlu0 %345
    %348 = vset.pattern.permute.xlu0 3
    %349 = vperm.xlu0 %348, %v117
    %v350 = vpop.permute.xlu0 %349
    %352 = vset.pattern.permute.xlu0 3
    %353 = vperm.xlu0 %352, %v118
    %v354 = vpop.permute.xlu0 %353
    %356 = vset.pattern.permute.xlu0 3
    %357 = vperm.xlu0 %356, %v119
    %v358 = vpop.permute.xlu0 %357
    %360 = vset.pattern.permute.xlu0 3
    %361 = vperm.xlu0 %360, %v120
    %v362 = vpop.permute.xlu0 %361
    %364 = vset.pattern.permute.xlu0 3
    %365 = vperm.xlu0 %364, %v121
    %v366 = vpop.permute.xlu0 %365
    %368 = vset.pattern.permute.xlu0 3
    %369 = vperm.xlu0 %368, %v122
    %v370 = vpop.permute.xlu0 %369
    %372 = vset.pattern.permute.xlu0 3
    %373 = vperm.xlu0 %372, %v123
    %v374 = vpop.permute.xlu0 %373
    %376 = vset.pattern.permute.xlu0 3
    %377 = vperm.xlu0 %376, %v124
    %v378 = vpop.permute.xlu0 %377
    %380 = vset.pattern.permute.xlu0 3
    %381 = vperm.xlu0 %380, %v125
    %v382 = vpop.permute.xlu0 %381
    %384 = vset.pattern.permute.xlu0 3
    %385 = vperm.xlu0 %384, %v126
    %v386 = vpop.permute.xlu0 %385
    %388 = vset.pattern.permute.xlu0 3
    %389 = vperm.xlu0 %388, %v127
    %v390 = vpop.permute.xlu0 %389
    %v392 = vlaneseq
    %v393 = vshrl.u32 %v392, 7
    %v394 = vsub.s32 2, %v393
    %v395 = vrot.slane %v30, %v394
    %v396 = vmul.f32 %v330, %v395
    %v397 = vmul.f32 %v334, %v395
    %v398 = vmul.f32 %v338, %v395
    %v399 = vmul.f32 %v342, %v395
    %v400 = vmul.f32 %v346, %v395
    %v401 = vmul.f32 %v350, %v395
    %v402 = vmul.f32 %v354, %v395
    %v403 = vmul.f32 %v358, %v395
    %v404 = vmul.f32 %v362, %v395
    %v405 = vmul.f32 %v366, %v395
    %v406 = vmul.f32 %v370, %v395
    %v407 = vmul.f32 %v374, %v395
    %v408 = vmul.f32 %v378, %v395
    %v409 = vmul.f32 %v382, %v395
    %v410 = vmul.f32 %v386, %v395
    %v411 = vmul.f32 %v390, %v395
    %v412 = vadd.f32 %v312, %v396
    %v413 = vadd.f32 %v313, %v397
    %v414 = vadd.f32 %v314, %v398
    %v415 = vadd.f32 %v315, %v399
    %v416 = vadd.f32 %v316, %v400
    %v417 = vadd.f32 %v317, %v401
    %v418 = vadd.f32 %v318, %v402
    %v419 = vadd.f32 %v319, %v403
    %v420 = vadd.f32 %v320, %v404
    %v421 = vadd.f32 %v321, %v405
    %v422 = vadd.f32 %v322, %v406
    %v423 = vadd.f32 %v323, %v407
    %v424 = vadd.f32 %v324, %v408
    %v425 = vadd.f32 %v325, %v409
    %v426 = vadd.f32 %v326, %v410
    %v427 = vadd.f32 %v327, %v411
    %428 = vset.pattern.permute.xlu0 4
    %429 = vperm.xlu0 %428, %v112
    %v430 = vpop.permute.xlu0 %429
    %432 = vset.pattern.permute.xlu0 4
    %433 = vperm.xlu0 %432, %v113
    %v434 = vpop.permute.xlu0 %433
    %436 = vset.pattern.permute.xlu0 4
    %437 = vperm.xlu0 %436, %v114
    %v438 = vpop.permute.xlu0 %437
    %440 = vset.pattern.permute.xlu0 4
    %441 = vperm.xlu0 %440, %v115
    %v442 = vpop.permute.xlu0 %441
    %444 = vset.pattern.permute.xlu0 4
    %445 = vperm.xlu0 %444, %v116
    %v446 = vpop.permute.xlu0 %445
    %448 = vset.pattern.permute.xlu0 4
    %449 = vperm.xlu0 %448, %v117
    %v450 = vpop.permute.xlu0 %449
    %452 = vset.pattern.permute.xlu0 4
    %453 = vperm.xlu0 %452, %v118
    %v454 = vpop.permute.xlu0 %453
    %456 = vset.pattern.permute.xlu0 4
    %457 = vperm.xlu0 %456, %v119
    %v458 = vpop.permute.xlu0 %457
    %460 = vset.pattern.permute.xlu0 4
    %461 = vperm.xlu0 %460, %v120
    %v462 = vpop.permute.xlu0 %461
    %464 = vset.pattern.permute.xlu0 4
    %465 = vperm.xlu0 %464, %v121
    %v466 = vpop.permute.xlu0 %465
    %468 = vset.pattern.permute.xlu0 4
    %469 = vperm.xlu0 %468, %v122
    %v470 = vpop.permute.xlu0 %469
    %472 = vset.pattern.permute.xlu0 4
    %473 = vperm.xlu0 %472, %v123
    %v474 = vpop.permute.xlu0 %473
    %476 = vset.pattern.permute.xlu0 4
    %477 = vperm.xlu0 %476, %v124
    %v478 = vpop.permute.xlu0 %477
    %480 = vset.pattern.permute.xlu0 4
    %481 = vperm.xlu0 %480, %v125
    %v482 = vpop.permute.xlu0 %481
    %484 = vset.pattern.permute.xlu0 4
    %485 = vperm.xlu0 %484, %v126
    %v486 = vpop.permute.xlu0 %485
    %488 = vset.pattern.permute.xlu0 4
    %489 = vperm.xlu0 %488, %v127
    %v490 = vpop.permute.xlu0 %489
    %v492 = vlaneseq
    %v493 = vshrl.u32 %v492, 7
    %v494 = vsub.s32 3, %v493
    %v495 = vrot.slane %v30, %v494
    %v496 = vmul.f32 %v430, %v495
    %v497 = vmul.f32 %v434, %v495
    %v498 = vmul.f32 %v438, %v495
    %v499 = vmul.f32 %v442, %v495
    %v500 = vmul.f32 %v446, %v495
    %v501 = vmul.f32 %v450, %v495
    %v502 = vmul.f32 %v454, %v495
    %v503 = vmul.f32 %v458, %v495
    %v504 = vmul.f32 %v462, %v495
    %v505 = vmul.f32 %v466, %v495
    %v506 = vmul.f32 %v470, %v495
    %v507 = vmul.f32 %v474, %v495
    %v508 = vmul.f32 %v478, %v495
    %v509 = vmul.f32 %v482, %v495
    %v510 = vmul.f32 %v486, %v495
    %v511 = vmul.f32 %v490, %v495
    %v512 = vadd.f32 %v412, %v496
    %v513 = vadd.f32 %v413, %v497
    %v514 = vadd.f32 %v414, %v498
    %v515 = vadd.f32 %v415, %v499
    %v516 = vadd.f32 %v416, %v500
    %v517 = vadd.f32 %v417, %v501
    %v518 = vadd.f32 %v418, %v502
    %v519 = vadd.f32 %v419, %v503
    %v520 = vadd.f32 %v420, %v504
    %v521 = vadd.f32 %v421, %v505
    %v522 = vadd.f32 %v422, %v506
    %v523 = vadd.f32 %v423, %v507
    %v524 = vadd.f32 %v424, %v508
    %v525 = vadd.f32 %v425, %v509
    %v526 = vadd.f32 %v426, %v510
    %v527 = vadd.f32 %v427, %v511
    %v528 = vlaneseq
    %v529 = vshrl.u32 %v528, 7
    %v530 = vsub.s32 4, %v529
    %v531 = vrot.slane %v30, %v530
    %v532 = vadd.f32 %v512, %v531
    %v533 = vadd.f32 %v513, %v531
    %v534 = vadd.f32 %v514, %v531
    %v535 = vadd.f32 %v515, %v531
    %v536 = vadd.f32 %v516, %v531
    %v537 = vadd.f32 %v517, %v531
    %v538 = vadd.f32 %v518, %v531
    %v539 = vadd.f32 %v519, %v531
    %v540 = vadd.f32 %v520, %v531
    %v541 = vadd.f32 %v521, %v531
    %v542 = vadd.f32 %v522, %v531
    %v543 = vadd.f32 %v523, %v531
    %v544 = vadd.f32 %v524, %v531
    %v545 = vadd.f32 %v525, %v531
    %v546 = vadd.f32 %v526, %v531
    %v547 = vadd.f32 %v527, %v531
    %v548 = vmax.f32 %v532, 0.0
    %v549 = vmax.f32 %v533, 0.0
    %v550 = vmax.f32 %v534, 0.0
    %v551 = vmax.f32 %v535, 0.0
    %v552 = vmax.f32 %v536, 0.0
    %v553 = vmax.f32 %v537, 0.0
    %v554 = vmax.f32 %v538, 0.0
    %v555 = vmax.f32 %v539, 0.0
    %v556 = vmax.f32 %v540, 0.0
    %v557 = vmax.f32 %v541, 0.0
    %v558 = vmax.f32 %v542, 0.0
    %v559 = vmax.f32 %v543, 0.0
    %v560 = vmax.f32 %v544, 0.0
    %v561 = vmax.f32 %v545, 0.0
    %v562 = vmax.f32 %v546, 0.0
    %v563 = vmax.f32 %v547, 0.0
    %v564 = vpack.c.bf16 %v549, %v548
    %v565 = vpack.c.bf16 %v551, %v550
    %v566 = vpack.c.bf16 %v553, %v552
    %v567 = vpack.c.bf16 %v555, %v554
    %v568 = vpack.c.bf16 %v557, %v556
    %v569 = vpack.c.bf16 %v559, %v558
    %v570 = vpack.c.bf16 %v561, %v560
    %v571 = vpack.c.bf16 %v563, %v562
    %v572 = vlaneseq
    %v573 = vshrl.u32 %v572, 7
    %v574 = vsub.s32 5, %v573
    %v575 = vrot.slane %v30, %v574
    %v592 = vunpack.c.l.b16 %v32
    %v593 = vunpack.c.l.b16 %v33
    %v594 = vunpack.c.l.b16 %v34
    %v595 = vunpack.c.l.b16 %v35
    %v596 = vunpack.c.l.b16 %v36
    %v597 = vunpack.c.l.b16 %v37
    %v598 = vunpack.c.l.b16 %v38
    %v599 = vunpack.c.l.b16 %v39
    %v600 = vunpack.c.l.b16 %v40
    %v601 = vunpack.c.l.b16 %v41
    %v602 = vunpack.c.l.b16 %v42
    %v603 = vunpack.c.l.b16 %v43
    %v604 = vunpack.c.l.b16 %v44
    %v605 = vunpack.c.l.b16 %v45
    %v606 = vunpack.c.l.b16 %v46
    %v607 = vunpack.c.l.b16 %v47
    %v608 = vpack.c.b16 %v593, %v592
    %v609 = vpack.c.b16 %v595, %v594
    %v610 = vpack.c.b16 %v597, %v596
    %v611 = vpack.c.b16 %v599, %v598
    %v612 = vpack.c.b16 %v601, %v600
    %v613 = vpack.c.b16 %v603, %v602
    %v614 = vpack.c.b16 %v605, %v604
    %v615 = vpack.c.b16 %v607, %v606
    %624 = vmatprep.subr.bf16.mxu0 0
    %625 = vmatpush1.bf16.msra.mxu0 %v615
    %626 = vmatprep.subr.bf16.mxu0 0
    %627 = vmatpush1.bf16.msra.mxu0 %v614
    %628 = vmatprep.subr.bf16.mxu0 0
    %629 = vmatpush1.bf16.msra.mxu0 %v613
    %630 = vmatprep.subr.bf16.mxu0 0
    %631 = vmatpush1.bf16.msra.mxu0 %v612
    %632 = vmatprep.subr.bf16.mxu0 0
    %633 = vmatpush1.bf16.msra.mxu0 %v611
    %634 = vmatprep.subr.bf16.mxu0 0
    %635 = vmatpush1.bf16.msra.mxu0 %v610
    %636 = vmatprep.subr.bf16.mxu0 0
    %637 = vmatpush1.bf16.msra.mxu0 %v609
    %638 = vmatprep.subr.bf16.mxu0 0
    %639 = vmatpush1.bf16.msra.mxu0 %v608
    %640 = vmatprep.subr.bf16.mxu0 0
    %641 = vmatpush2.bf16.msra.mxu0 0
    %642 = vmatprep.subr.bf16.mxu0 0
    %643 = vmatpush2.bf16.msra.mxu0 0
    %644 = vmatprep.subr.bf16.mxu0 0
    %645 = vmatpush2.bf16.msra.mxu0 0
    %646 = vmatprep.subr.bf16.mxu0 0
    %647 = vmatpush2.bf16.msra.mxu0 0
    %648 = vmatprep.subr.bf16.mxu0 0
    %649 = vmatpush2.bf16.msra.mxu0 0
    %650 = vmatprep.subr.bf16.mxu0 0
    %651 = vmatpush2.bf16.msra.mxu0 0
    %652 = vmatprep.subr.bf16.mxu0 0
    %653 = vmatpush2.bf16.msra.mxu0 0
    %654 = vmatprep.subr.bf16.mxu0 0
    %655 = vmatpush2.bf16.msra.mxu0 0
    %656 = vmatprep.mubr.bf16.mxu0 0
    %657 = vmatmul.mubr.bf16.gmra.mxu0 %v564
    %v658 = vpop.f32.mrf.mxu0
    %v659 = vadd.f32 %v575, %v658
    %v660 = vpop.f32.mrf.mxu0
    %v661 = vpop.f32.mrf.mxu0
    %v662 = vadd.f32 %v575, %v661
    %v663 = vpop.f32.mrf.mxu0
    %664 = vmatprep.mubr.bf16.mxu0 0
    %665 = vmatmul.mubr.bf16.gmra.mxu0 %v565
    %v666 = vpop.f32.mrf.mxu0
    %v667 = vadd.f32 %v575, %v666
    %v668 = vpop.f32.mrf.mxu0
    %v669 = vpop.f32.mrf.mxu0
    %v670 = vadd.f32 %v575, %v669
    %v671 = vpop.f32.mrf.mxu0
    %672 = vmatprep.mubr.bf16.mxu0 0
    %673 = vmatmul.mubr.bf16.gmra.mxu0 %v566
    %v674 = vpop.f32.mrf.mxu0
    %v675 = vadd.f32 %v575, %v674
    %v676 = vpop.f32.mrf.mxu0
    %v677 = vpop.f32.mrf.mxu0
    %v678 = vadd.f32 %v575, %v677
    %v679 = vpop.f32.mrf.mxu0
    %680 = vmatprep.mubr.bf16.mxu0 0
    %681 = vmatmul.mubr.bf16.gmra.mxu0 %v567
    %v682 = vpop.f32.mrf.mxu0
    %v683 = vadd.f32 %v575, %v682
    %v684 = vpop.f32.mrf.mxu0
    %v685 = vpop.f32.mrf.mxu0
    %v686 = vadd.f32 %v575, %v685
    %v687 = vpop.f32.mrf.mxu0
    %688 = vmatprep.mubr.bf16.mxu0 0
    %689 = vmatmul.mubr.bf16.gmra.mxu0 %v568
    %v690 = vpop.f32.mrf.mxu0
    %v691 = vadd.f32 %v575, %v690
    %v692 = vpop.f32.mrf.mxu0
    %v693 = vpop.f32.mrf.mxu0
    %v694 = vadd.f32 %v575, %v693
    %v695 = vpop.f32.mrf.mxu0
    %696 = vmatprep.mubr.bf16.mxu0 0
    %697 = vmatmul.mubr.bf16.gmra.mxu0 %v569
    %v698 = vpop.f32.mrf.mxu0
    %v699 = vadd.f32 %v575, %v698
    %v700 = vpop.f32.mrf.mxu0
    %v701 = vpop.f32.mrf.mxu0
    %v702 = vadd.f32 %v575, %v701
    %v703 = vpop.f32.mrf.mxu0
    %704 = vmatprep.mubr.bf16.mxu0 0
    %705 = vmatmul.mubr.bf16.gmra.mxu0 %v570
    %v706 = vpop.f32.mrf.mxu0
    %v707 = vadd.f32 %v575, %v706
    %v708 = vpop.f32.mrf.mxu0
    %v709 = vpop.f32.mrf.mxu0
    %v710 = vadd.f32 %v575, %v709
    %v711 = vpop.f32.mrf.mxu0
    %712 = vmatprep.mubr.bf16.mxu0 0
    %713 = vmatmul.mubr.bf16.gmra.mxu0 %v571
    %v714 = vpop.f32.mrf.mxu0
    %v715 = vadd.f32 %v575, %v714
    %v716 = vpop.f32.mrf.mxu0
    %v717 = vpop.f32.mrf.mxu0
    %v718 = vadd.f32 %v575, %v717
    %v719 = vpop.f32.mrf.mxu0
    %720 = vdwg.mxu0
    %v721 = vmax.f32 %v659, 0.0
    %v722 = vmax.f32 %v662, 0.0
    %v723 = vmax.f32 %v667, 0.0
    %v724 = vmax.f32 %v670, 0.0
    %v725 = vmax.f32 %v675, 0.0
    %v726 = vmax.f32 %v678, 0.0
    %v727 = vmax.f32 %v683, 0.0
    %v728 = vmax.f32 %v686, 0.0
    %v729 = vmax.f32 %v691, 0.0
    %v730 = vmax.f32 %v694, 0.0
    %v731 = vmax.f32 %v699, 0.0
    %v732 = vmax.f32 %v702, 0.0
    %v733 = vmax.f32 %v707, 0.0
    %v734 = vmax.f32 %v710, 0.0
    %v735 = vmax.f32 %v715, 0.0
    %v736 = vmax.f32 %v718, 0.0
    %v737 = vpack.c.bf16 %v722, %v721
    %v738 = vpack.c.bf16 %v724, %v723
    %v739 = vpack.c.bf16 %v726, %v725
    %v740 = vpack.c.bf16 %v728, %v727
    %v741 = vpack.c.bf16 %v730, %v729
    %v742 = vpack.c.bf16 %v732, %v731
    %v743 = vpack.c.bf16 %v734, %v733
    %v744 = vpack.c.bf16 %v736, %v735
    %v745 = vlaneseq
    %v746 = vshrl.u32 %v745, 7
    %v747 = vsub.s32 6, %v746
    %v748 = vrot.slane %v30, %v747
    %v765 = vunpack.c.l.b16 %v48
    %v766 = vunpack.c.l.b16 %v49
    %v767 = vunpack.c.l.b16 %v50
    %v768 = vunpack.c.l.b16 %v51
    %v769 = vunpack.c.l.b16 %v52
    %v770 = vunpack.c.l.b16 %v53
    %v771 = vunpack.c.l.b16 %v54
    %v772 = vunpack.c.l.b16 %v55
    %v773 = vunpack.c.l.b16 %v56
    %v774 = vunpack.c.l.b16 %v57
    %v775 = vunpack.c.l.b16 %v58
    %v776 = vunpack.c.l.b16 %v59
    %v777 = vunpack.c.l.b16 %v60
    %v778 = vunpack.c.l.b16 %v61
    %v779 = vunpack.c.l.b16 %v62
    %v780 = vunpack.c.l.b16 %v63
    %v781 = vpack.c.b16 %v766, %v765
    %v782 = vpack.c.b16 %v768, %v767
    %v783 = vpack.c.b16 %v770, %v769
    %v784 = vpack.c.b16 %v772, %v771
    %v785 = vpack.c.b16 %v774, %v773
    %v786 = vpack.c.b16 %v776, %v775
    %v787 = vpack.c.b16 %v778, %v777
    %v788 = vpack.c.b16 %v780, %v779
    %797 = vmatprep.subr.bf16.mxu0 0
    %798 = vmatpush1.bf16.msra.mxu0 %v788
    %799 = vmatprep.subr.bf16.mxu0 0
    %800 = vmatpush1.bf16.msra.mxu0 %v787
    %801 = vmatprep.subr.bf16.mxu0 0
    %802 = vmatpush1.bf16.msra.mxu0 %v786
    %803 = vmatprep.subr.bf16.mxu0 0
    %804 = vmatpush1.bf16.msra.mxu0 %v785
    %805 = vmatprep.subr.bf16.mxu0 0
    %806 = vmatpush1.bf16.msra.mxu0 %v784
    %807 = vmatprep.subr.bf16.mxu0 0
    %808 = vmatpush1.bf16.msra.mxu0 %v783
    %809 = vmatprep.subr.bf16.mxu0 0
    %810 = vmatpush1.bf16.msra.mxu0 %v782
    %811 = vmatprep.subr.bf16.mxu0 0
    %812 = vmatpush1.bf16.msra.mxu0 %v781
    %813 = vmatprep.subr.bf16.mxu0 0
    %814 = vmatpush2.bf16.msra.mxu0 0
    %815 = vmatprep.subr.bf16.mxu0 0
    %816 = vmatpush2.bf16.msra.mxu0 0
    %817 = vmatprep.subr.bf16.mxu0 0
    %818 = vmatpush2.bf16.msra.mxu0 0
    %819 = vmatprep.subr.bf16.mxu0 0
    %820 = vmatpush2.bf16.msra.mxu0 0
    %821 = vmatprep.subr.bf16.mxu0 0
    %822 = vmatpush2.bf16.msra.mxu0 0
    %823 = vmatprep.subr.bf16.mxu0 0
    %824 = vmatpush2.bf16.msra.mxu0 0
    %825 = vmatprep.subr.bf16.mxu0 0
    %826 = vmatpush2.bf16.msra.mxu0 0
    %827 = vmatprep.subr.bf16.mxu0 0
    %828 = vmatpush2.bf16.msra.mxu0 0
    %829 = vmatprep.mubr.bf16.mxu0 0
    %830 = vmatmul.mubr.bf16.gmra.mxu0 %v737
    %v831 = vpop.f32.mrf.mxu0
    %v832 = vadd.f32 %v748, %v831
    %v833 = vpop.f32.mrf.mxu0
    %v834 = vpop.f32.mrf.mxu0
    %v835 = vadd.f32 %v748, %v834
    %v836 = vpop.f32.mrf.mxu0
    %837 = vmatprep.mubr.bf16.mxu0 0
    %838 = vmatmul.mubr.bf16.gmra.mxu0 %v738
    %v839 = vpop.f32.mrf.mxu0
    %v840 = vadd.f32 %v748, %v839
    %v841 = vpop.f32.mrf.mxu0
    %v842 = vpop.f32.mrf.mxu0
    %v843 = vadd.f32 %v748, %v842
    %v844 = vpop.f32.mrf.mxu0
    %845 = vmatprep.mubr.bf16.mxu0 0
    %846 = vmatmul.mubr.bf16.gmra.mxu0 %v739
    %v847 = vpop.f32.mrf.mxu0
    %v848 = vadd.f32 %v748, %v847
    %v849 = vpop.f32.mrf.mxu0
    %v850 = vpop.f32.mrf.mxu0
    %v851 = vadd.f32 %v748, %v850
    %v852 = vpop.f32.mrf.mxu0
    %853 = vmatprep.mubr.bf16.mxu0 0
    %854 = vmatmul.mubr.bf16.gmra.mxu0 %v740
    %v855 = vpop.f32.mrf.mxu0
    %v856 = vadd.f32 %v748, %v855
    %v857 = vpop.f32.mrf.mxu0
    %v858 = vpop.f32.mrf.mxu0
    %v859 = vadd.f32 %v748, %v858
    %v860 = vpop.f32.mrf.mxu0
    %861 = vmatprep.mubr.bf16.mxu0 0
    %862 = vmatmul.mubr.bf16.gmra.mxu0 %v741
    %v863 = vpop.f32.mrf.mxu0
    %v864 = vadd.f32 %v748, %v863
    %v865 = vpop.f32.mrf.mxu0
    %v866 = vpop.f32.mrf.mxu0
    %v867 = vadd.f32 %v748, %v866
    %v868 = vpop.f32.mrf.mxu0
    %869 = vmatprep.mubr.bf16.mxu0 0
    %870 = vmatmul.mubr.bf16.gmra.mxu0 %v742
    %v871 = vpop.f32.mrf.mxu0
    %v872 = vadd.f32 %v748, %v871
    %v873 = vpop.f32.mrf.mxu0
    %v874 = vpop.f32.mrf.mxu0
    %v875 = vadd.f32 %v748, %v874
    %v876 = vpop.f32.mrf.mxu0
    %877 = vmatprep.mubr.bf16.mxu0 0
    %878 = vmatmul.mubr.bf16.gmra.mxu0 %v743
    %v879 = vpop.f32.mrf.mxu0
    %v880 = vadd.f32 %v748, %v879
    %v881 = vpop.f32.mrf.mxu0
    %v882 = vpop.f32.mrf.mxu0
    %v883 = vadd.f32 %v748, %v882
    %v884 = vpop.f32.mrf.mxu0
    %885 = vmatprep.mubr.bf16.mxu0 0
    %886 = vmatmul.mubr.bf16.gmra.mxu0 %v744
    %v887 = vpop.f32.mrf.mxu0
    %v888 = vadd.f32 %v748, %v887
    %v889 = vpop.f32.mrf.mxu0
    %v890 = vpop.f32.mrf.mxu0
    %v891 = vadd.f32 %v748, %v890
    %v892 = vpop.f32.mrf.mxu0
    %893 = vdwg.mxu0
    %v894 = vadd.f32 %v548, %v832
    %v895 = vadd.f32 %v549, %v835
    %v896 = vadd.f32 %v550, %v840
    %v897 = vadd.f32 %v551, %v843
    %v898 = vadd.f32 %v552, %v848
    %v899 = vadd.f32 %v553, %v851
    %v900 = vadd.f32 %v554, %v856
    %v901 = vadd.f32 %v555, %v859
    %v902 = vadd.f32 %v556, %v864
    %v903 = vadd.f32 %v557, %v867
    %v904 = vadd.f32 %v558, %v872
    %v905 = vadd.f32 %v559, %v875
    %v906 = vadd.f32 %v560, %v880
    %v907 = vadd.f32 %v561, %v883
    %v908 = vadd.f32 %v562, %v888
    %v909 = vadd.f32 %v563, %v891
    %v910 = vmax.f32 %v894, 0.0
    %v911 = vmax.f32 %v895, 0.0
    %v912 = vmax.f32 %v896, 0.0
    %v913 = vmax.f32 %v897, 0.0
    %v914 = vmax.f32 %v898, 0.0
    %v915 = vmax.f32 %v899, 0.0
    %v916 = vmax.f32 %v900, 0.0
    %v917 = vmax.f32 %v901, 0.0
    %v918 = vmax.f32 %v902, 0.0
    %v919 = vmax.f32 %v903, 0.0
    %v920 = vmax.f32 %v904, 0.0
    %v921 = vmax.f32 %v905, 0.0
    %v922 = vmax.f32 %v906, 0.0
    %v923 = vmax.f32 %v907, 0.0
    %v924 = vmax.f32 %v908, 0.0
    %v925 = vmax.f32 %v909, 0.0
    %v926 = vpack.c.bf16 %v911, %v910
    %v927 = vpack.c.bf16 %v913, %v912
    %v928 = vpack.c.bf16 %v915, %v914
    %v929 = vpack.c.bf16 %v917, %v916
    %v930 = vpack.c.bf16 %v919, %v918
    %v931 = vpack.c.bf16 %v921, %v920
    %v932 = vpack.c.bf16 %v923, %v922
    %v933 = vpack.c.bf16 %v925, %v924
    %v934 = vlaneseq
    %v935 = vshrl.u32 %v934, 7
    %v936 = vsub.s32 7, %v935
    %v937 = vrot.slane %v30, %v936
    %v954 = vunpack.c.l.b16 %v64
    %v955 = vunpack.c.l.b16 %v65
    %v956 = vunpack.c.l.b16 %v66
    %v957 = vunpack.c.l.b16 %v67
    %v958 = vunpack.c.l.b16 %v68
    %v959 = vunpack.c.l.b16 %v69
    %v960 = vunpack.c.l.b16 %v70
    %v961 = vunpack.c.l.b16 %v71
    %v962 = vunpack.c.l.b16 %v72
    %v963 = vunpack.c.l.b16 %v73
    %v964 = vunpack.c.l.b16 %v74
    %v965 = vunpack.c.l.b16 %v75
    %v966 = vunpack.c.l.b16 %v76
    %v967 = vunpack.c.l.b16 %v77
    %v968 = vunpack.c.l.b16 %v78
    %v969 = vunpack.c.l.b16 %v79
    %v970 = vpack.c.b16 %v955, %v954
    %v971 = vpack.c.b16 %v957, %v956
    %v972 = vpack.c.b16 %v959, %v958
    %v973 = vpack.c.b16 %v961, %v960
    %v974 = vpack.c.b16 %v963, %v962
    %v975 = vpack.c.b16 %v965, %v964
    %v976 = vpack.c.b16 %v967, %v966
    %v977 = vpack.c.b16 %v969, %v968
    %986 = vmatprep.subr.bf16.mxu0 0
    %987 = vmatpush1.bf16.msra.mxu0 %v977
    %988 = vmatprep.subr.bf16.mxu0 0
    %989 = vmatpush1.bf16.msra.mxu0 %v976
    %990 = vmatprep.subr.bf16.mxu0 0
    %991 = vmatpush1.bf16.msra.mxu0 %v975
    %992 = vmatprep.subr.bf16.mxu0 0
    %993 = vmatpush1.bf16.msra.mxu0 %v974
    %994 = vmatprep.subr.bf16.mxu0 0
    %995 = vmatpush1.bf16.msra.mxu0 %v973
    %996 = vmatprep.subr.bf16.mxu0 0
    %997 = vmatpush1.bf16.msra.mxu0 %v972
    %998 = vmatprep.subr.bf16.mxu0 0
    %999 = vmatpush1.bf16.msra.mxu0 %v971
    %1000 = vmatprep.subr.bf16.mxu0 0
    %1001 = vmatpush1.bf16.msra.mxu0 %v970
    %1002 = vmatprep.subr.bf16.mxu0 0
    %1003 = vmatpush2.bf16.msra.mxu0 0
    %1004 = vmatprep.subr.bf16.mxu0 0
    %1005 = vmatpush2.bf16.msra.mxu0 0
    %1006 = vmatprep.subr.bf16.mxu0 0
    %1007 = vmatpush2.bf16.msra.mxu0 0
    %1008 = vmatprep.subr.bf16.mxu0 0
    %1009 = vmatpush2.bf16.msra.mxu0 0
    %1010 = vmatprep.subr.bf16.mxu0 0
    %1011 = vmatpush2.bf16.msra.mxu0 0
    %1012 = vmatprep.subr.bf16.mxu0 0
    %1013 = vmatpush2.bf16.msra.mxu0 0
    %1014 = vmatprep.subr.bf16.mxu0 0
    %1015 = vmatpush2.bf16.msra.mxu0 0
    %1016 = vmatprep.subr.bf16.mxu0 0
    %1017 = vmatpush2.bf16.msra.mxu0 0
    %1018 = vmatprep.mubr.bf16.mxu0 0
    %1019 = vmatmul.mubr.bf16.gmra.mxu0 %v926
    %v1020 = vpop.f32.mrf.mxu0
    %v1021 = vadd.f32 %v937, %v1020
    %v1022 = vpop.f32.mrf.mxu0
    %v1023 = vpop.f32.mrf.mxu0
    %v1024 = vadd.f32 %v937, %v1023
    %v1025 = vpop.f32.mrf.mxu0
    %1026 = vmatprep.mubr.bf16.mxu0 0
    %1027 = vmatmul.mubr.bf16.gmra.mxu0 %v927
    %v1028 = vpop.f32.mrf.mxu0
    %v1029 = vadd.f32 %v937, %v1028
    %v1030 = vpop.f32.mrf.mxu0
    %v1031 = vpop.f32.mrf.mxu0
    %v1032 = vadd.f32 %v937, %v1031
    %v1033 = vpop.f32.mrf.mxu0
    %1034 = vmatprep.mubr.bf16.mxu0 0
    %1035 = vmatmul.mubr.bf16.gmra.mxu0 %v928
    %v1036 = vpop.f32.mrf.mxu0
    %v1037 = vadd.f32 %v937, %v1036
    %v1038 = vpop.f32.mrf.mxu0
    %v1039 = vpop.f32.mrf.mxu0
    %v1040 = vadd.f32 %v937, %v1039
    %v1041 = vpop.f32.mrf.mxu0
    %1042 = vmatprep.mubr.bf16.mxu0 0
    %1043 = vmatmul.mubr.bf16.gmra.mxu0 %v929
    %v1044 = vpop.f32.mrf.mxu0
    %v1045 = vadd.f32 %v937, %v1044
    %v1046 = vpop.f32.mrf.mxu0
    %v1047 = vpop.f32.mrf.mxu0
    %v1048 = vadd.f32 %v937, %v1047
    %v1049 = vpop.f32.mrf.mxu0
    %1050 = vmatprep.mubr.bf16.mxu0 0
    %1051 = vmatmul.mubr.bf16.gmra.mxu0 %v930
    %v1052 = vpop.f32.mrf.mxu0
    %v1053 = vadd.f32 %v937, %v1052
    %v1054 = vpop.f32.mrf.mxu0
    %v1055 = vpop.f32.mrf.mxu0
    %v1056 = vadd.f32 %v937, %v1055
    %v1057 = vpop.f32.mrf.mxu0
    %1058 = vmatprep.mubr.bf16.mxu0 0
    %1059 = vmatmul.mubr.bf16.gmra.mxu0 %v931
    %v1060 = vpop.f32.mrf.mxu0
    %v1061 = vadd.f32 %v937, %v1060
    %v1062 = vpop.f32.mrf.mxu0
    %v1063 = vpop.f32.mrf.mxu0
    %v1064 = vadd.f32 %v937, %v1063
    %v1065 = vpop.f32.mrf.mxu0
    %1066 = vmatprep.mubr.bf16.mxu0 0
    %1067 = vmatmul.mubr.bf16.gmra.mxu0 %v932
    %v1068 = vpop.f32.mrf.mxu0
    %v1069 = vadd.f32 %v937, %v1068
    %v1070 = vpop.f32.mrf.mxu0
    %v1071 = vpop.f32.mrf.mxu0
    %v1072 = vadd.f32 %v937, %v1071
    %v1073 = vpop.f32.mrf.mxu0
    %1074 = vmatprep.mubr.bf16.mxu0 0
    %1075 = vmatmul.mubr.bf16.gmra.mxu0 %v933
    %v1076 = vpop.f32.mrf.mxu0
    %v1077 = vadd.f32 %v937, %v1076
    %v1078 = vpop.f32.mrf.mxu0
    %v1079 = vpop.f32.mrf.mxu0
    %v1080 = vadd.f32 %v937, %v1079
    %v1081 = vpop.f32.mrf.mxu0
    %1082 = vdwg.mxu0
    %v1083 = vmax.f32 %v1021, 0.0
    %v1084 = vmax.f32 %v1024, 0.0
    %v1085 = vmax.f32 %v1029, 0.0
    %v1086 = vmax.f32 %v1032, 0.0
    %v1087 = vmax.f32 %v1037, 0.0
    %v1088 = vmax.f32 %v1040, 0.0
    %v1089 = vmax.f32 %v1045, 0.0
    %v1090 = vmax.f32 %v1048, 0.0
    %v1091 = vmax.f32 %v1053, 0.0
    %v1092 = vmax.f32 %v1056, 0.0
    %v1093 = vmax.f32 %v1061, 0.0
    %v1094 = vmax.f32 %v1064, 0.0
    %v1095 = vmax.f32 %v1069, 0.0
    %v1096 = vmax.f32 %v1072, 0.0
    %v1097 = vmax.f32 %v1077, 0.0
    %v1098 = vmax.f32 %v1080, 0.0
    %v1099 = vpack.c.bf16 %v1084, %v1083
    %v1100 = vpack.c.bf16 %v1086, %v1085
    %v1101 = vpack.c.bf16 %v1088, %v1087
    %v1102 = vpack.c.bf16 %v1090, %v1089
    %v1103 = vpack.c.bf16 %v1092, %v1091
    %v1104 = vpack.c.bf16 %v1094, %v1093
    %v1105 = vpack.c.bf16 %v1096, %v1095
    %v1106 = vpack.c.bf16 %v1098, %v1097
    %v1107 = vlaneseq
    %v1108 = vshrl.u32 %v1107, 7
    %v1109 = vsub.s32 0, %v1108
    %v1110 = vrot.slane %v31, %v1109
    %v1127 = vunpack.c.l.b16 %v80
    %v1128 = vunpack.c.l.b16 %v81
    %v1129 = vunpack.c.l.b16 %v82
    %v1130 = vunpack.c.l.b16 %v83
    %v1131 = vunpack.c.l.b16 %v84
    %v1132 = vunpack.c.l.b16 %v85
    %v1133 = vunpack.c.l.b16 %v86
    %v1134 = vunpack.c.l.b16 %v87
    %v1135 = vunpack.c.l.b16 %v88
    %v1136 = vunpack.c.l.b16 %v89
    %v1137 = vunpack.c.l.b16 %v90
    %v1138 = vunpack.c.l.b16 %v91
    %v1139 = vunpack.c.l.b16 %v92
    %v1140 = vunpack.c.l.b16 %v93
    %v1141 = vunpack.c.l.b16 %v94
    %v1142 = vunpack.c.l.b16 %v95
    %v1143 = vpack.c.b16 %v1128, %v1127
    %v1144 = vpack.c.b16 %v1130, %v1129
    %v1145 = vpack.c.b16 %v1132, %v1131
    %v1146 = vpack.c.b16 %v1134, %v1133
    %v1147 = vpack.c.b16 %v1136, %v1135
    %v1148 = vpack.c.b16 %v1138, %v1137
    %v1149 = vpack.c.b16 %v1140, %v1139
    %v1150 = vpack.c.b16 %v1142, %v1141
    %1159 = vmatprep.subr.bf16.mxu0 0
    %1160 = vmatpush1.bf16.msra.mxu0 %v1150
    %1161 = vmatprep.subr.bf16.mxu0 0
    %1162 = vmatpush1.bf16.msra.mxu0 %v1149
    %1163 = vmatprep.subr.bf16.mxu0 0
    %1164 = vmatpush1.bf16.msra.mxu0 %v1148
    %1165 = vmatprep.subr.bf16.mxu0 0
    %1166 = vmatpush1.bf16.msra.mxu0 %v1147
    %1167 = vmatprep.subr.bf16.mxu0 0
    %1168 = vmatpush1.bf16.msra.mxu0 %v1146
    %1169 = vmatprep.subr.bf16.mxu0 0
    %1170 = vmatpush1.bf16.msra.mxu0 %v1145
    %1171 = vmatprep.subr.bf16.mxu0 0
    %1172 = vmatpush1.bf16.msra.mxu0 %v1144
    %1173 = vmatprep.subr.bf16.mxu0 0
    %1174 = vmatpush1.bf16.msra.mxu0 %v1143
    %1175 = vmatprep.subr.bf16.mxu0 0
    %1176 = vmatpush2.bf16.msra.mxu0 0
    %1177 = vmatprep.subr.bf16.mxu0 0
    %1178 = vmatpush2.bf16.msra.mxu0 0
    %1179 = vmatprep.subr.bf16.mxu0 0
    %1180 = vmatpush2.bf16.msra.mxu0 0
    %1181 = vmatprep.subr.bf16.mxu0 0
    %1182 = vmatpush2.bf16.msra.mxu0 0
    %1183 = vmatprep.subr.bf16.mxu0 0
    %1184 = vmatpush2.bf16.msra.mxu0 0
    %1185 = vmatprep.subr.bf16.mxu0 0
    %1186 = vmatpush2.bf16.msra.mxu0 0
    %1187 = vmatprep.subr.bf16.mxu0 0
    %1188 = vmatpush2.bf16.msra.mxu0 0
    %1189 = vmatprep.subr.bf16.mxu0 0
    %1190 = vmatpush2.bf16.msra.mxu0 0
    %1191 = vmatprep.mubr.bf16.mxu0 0
    %1192 = vmatmul.mubr.bf16.gmra.mxu0 %v1099
    %v1193 = vpop.f32.mrf.mxu0
    %v1194 = vadd.f32 %v1110, %v1193
    %v1195 = vpop.f32.mrf.mxu0
    %v1196 = vpop.f32.mrf.mxu0
    %v1197 = vadd.f32 %v1110, %v1196
    %v1198 = vpop.f32.mrf.mxu0
    %1199 = vmatprep.mubr.bf16.mxu0 0
    %1200 = vmatmul.mubr.bf16.gmra.mxu0 %v1100
    %v1201 = vpop.f32.mrf.mxu0
    %v1202 = vadd.f32 %v1110, %v1201
    %v1203 = vpop.f32.mrf.mxu0
    %v1204 = vpop.f32.mrf.mxu0
    %v1205 = vadd.f32 %v1110, %v1204
    %v1206 = vpop.f32.mrf.mxu0
    %1207 = vmatprep.mubr.bf16.mxu0 0
    %1208 = vmatmul.mubr.bf16.gmra.mxu0 %v1101
    %v1209 = vpop.f32.mrf.mxu0
    %v1210 = vadd.f32 %v1110, %v1209
    %v1211 = vpop.f32.mrf.mxu0
    %v1212 = vpop.f32.mrf.mxu0
    %v1213 = vadd.f32 %v1110, %v1212
    %v1214 = vpop.f32.mrf.mxu0
    %1215 = vmatprep.mubr.bf16.mxu0 0
    %1216 = vmatmul.mubr.bf16.gmra.mxu0 %v1102
    %v1217 = vpop.f32.mrf.mxu0
    %v1218 = vadd.f32 %v1110, %v1217
    %v1219 = vpop.f32.mrf.mxu0
    %v1220 = vpop.f32.mrf.mxu0
    %v1221 = vadd.f32 %v1110, %v1220
    %v1222 = vpop.f32.mrf.mxu0
    %1223 = vmatprep.mubr.bf16.mxu0 0
    %1224 = vmatmul.mubr.bf16.gmra.mxu0 %v1103
    %v1225 = vpop.f32.mrf.mxu0
    %v1226 = vadd.f32 %v1110, %v1225
    %v1227 = vpop.f32.mrf.mxu0
    %v1228 = vpop.f32.mrf.mxu0
    %v1229 = vadd.f32 %v1110, %v1228
    %v1230 = vpop.f32.mrf.mxu0
    %1231 = vmatprep.mubr.bf16.mxu0 0
    %1232 = vmatmul.mubr.bf16.gmra.mxu0 %v1104
    %v1233 = vpop.f32.mrf.mxu0
    %v1234 = vadd.f32 %v1110, %v1233
    %v1235 = vpop.f32.mrf.mxu0
    %v1236 = vpop.f32.mrf.mxu0
    %v1237 = vadd.f32 %v1110, %v1236
    %v1238 = vpop.f32.mrf.mxu0
    %1239 = vmatprep.mubr.bf16.mxu0 0
    %1240 = vmatmul.mubr.bf16.gmra.mxu0 %v1105
    %v1241 = vpop.f32.mrf.mxu0
    %v1242 = vadd.f32 %v1110, %v1241
    %v1243 = vpop.f32.mrf.mxu0
    %v1244 = vpop.f32.mrf.mxu0
    %v1245 = vadd.f32 %v1110, %v1244
    %v1246 = vpop.f32.mrf.mxu0
    %1247 = vmatprep.mubr.bf16.mxu0 0
    %1248 = vmatmul.mubr.bf16.gmra.mxu0 %v1106
    %v1249 = vpop.f32.mrf.mxu0
    %v1250 = vadd.f32 %v1110, %v1249
    %v1251 = vpop.f32.mrf.mxu0
    %v1252 = vpop.f32.mrf.mxu0
    %v1253 = vadd.f32 %v1110, %v1252
    %v1254 = vpop.f32.mrf.mxu0
    %1255 = vdwg.mxu0
    %v1256 = vadd.f32 %v910, %v1194
    %v1257 = vadd.f32 %v911, %v1197
    %v1258 = vadd.f32 %v912, %v1202
    %v1259 = vadd.f32 %v913, %v1205
    %v1260 = vadd.f32 %v914, %v1210
    %v1261 = vadd.f32 %v915, %v1213
    %v1262 = vadd.f32 %v916, %v1218
    %v1263 = vadd.f32 %v917, %v1221
    %v1264 = vadd.f32 %v918, %v1226
    %v1265 = vadd.f32 %v919, %v1229
    %v1266 = vadd.f32 %v920, %v1234
    %v1267 = vadd.f32 %v921, %v1237
    %v1268 = vadd.f32 %v922, %v1242
    %v1269 = vadd.f32 %v923, %v1245
    %v1270 = vadd.f32 %v924, %v1250
    %v1271 = vadd.f32 %v925, %v1253
    %v1272 = vmax.f32 %v1256, 0.0
    %v1273 = vmax.f32 %v1257, 0.0
    %v1274 = vmax.f32 %v1258, 0.0
    %v1275 = vmax.f32 %v1259, 0.0
    %v1276 = vmax.f32 %v1260, 0.0
    %v1277 = vmax.f32 %v1261, 0.0
    %v1278 = vmax.f32 %v1262, 0.0
    %v1279 = vmax.f32 %v1263, 0.0
    %v1280 = vmax.f32 %v1264, 0.0
    %v1281 = vmax.f32 %v1265, 0.0
    %v1282 = vmax.f32 %v1266, 0.0
    %v1283 = vmax.f32 %v1267, 0.0
    %v1284 = vmax.f32 %v1268, 0.0
    %v1285 = vmax.f32 %v1269, 0.0
    %v1286 = vmax.f32 %v1270, 0.0
    %v1287 = vmax.f32 %v1271, 0.0
    %v1288 = vlaneseq
    %v1289 = vshrl.u32 %v1288, 7
    %v1290 = vsub.s32 2, %v1289
    %v1291 = vrot.slane %v31, %v1290
    %v1292 = vadd.f32 %v1272, %v1291
    %v1293 = vadd.f32 %v1273, %v1291
    %v1294 = vadd.f32 %v1274, %v1291
    %v1295 = vadd.f32 %v1275, %v1291
    %v1296 = vadd.f32 %v1276, %v1291
    %v1297 = vadd.f32 %v1277, %v1291
    %v1298 = vadd.f32 %v1278, %v1291
    %v1299 = vadd.f32 %v1279, %v1291
    %v1300 = vadd.f32 %v1280, %v1291
    %v1301 = vadd.f32 %v1281, %v1291
    %v1302 = vadd.f32 %v1282, %v1291
    %v1303 = vadd.f32 %v1283, %v1291
    %v1304 = vadd.f32 %v1284, %v1291
    %v1305 = vadd.f32 %v1285, %v1291
    %v1306 = vadd.f32 %v1286, %v1291
    %v1307 = vadd.f32 %v1287, %v1291
    %vm1308 = vcmp.eq.f32.partialorder %v112, 0.0
    %vm1309 = vcmp.eq.f32.partialorder %v113, 0.0
    %vm1310 = vcmp.eq.f32.partialorder %v114, 0.0
    %vm1311 = vcmp.eq.f32.partialorder %v115, 0.0
    %vm1312 = vcmp.eq.f32.partialorder %v116, 0.0
    %vm1313 = vcmp.eq.f32.partialorder %v117, 0.0
    %vm1314 = vcmp.eq.f32.partialorder %v118, 0.0
    %vm1315 = vcmp.eq.f32.partialorder %v119, 0.0
    %vm1316 = vcmp.eq.f32.partialorder %v120, 0.0
    %vm1317 = vcmp.eq.f32.partialorder %v121, 0.0
    %vm1318 = vcmp.eq.f32.partialorder %v122, 0.0
    %vm1319 = vcmp.eq.f32.partialorder %v123, 0.0
    %vm1320 = vcmp.eq.f32.partialorder %v124, 0.0
    %vm1321 = vcmp.eq.f32.partialorder %v125, 0.0
    %vm1322 = vcmp.eq.f32.partialorder %v126, 0.0
    %vm1323 = vcmp.eq.f32.partialorder %v127, 0.0
    %v1324 = vsel %vm1308, 1, 0
    %v1325 = vsel %vm1309, 1, 0
    %v1326 = vsel %vm1310, 1, 0
    %v1327 = vsel %vm1311, 1, 0
    %v1328 = vsel %vm1312, 1, 0
    %v1329 = vsel %vm1313, 1, 0
    %v1330 = vsel %vm1314, 1, 0
    %v1331 = vsel %vm1315, 1, 0
    %v1332 = vsel %vm1316, 1, 0
    %v1333 = vsel %vm1317, 1, 0
    %v1334 = vsel %vm1318, 1, 0
    %v1335 = vsel %vm1319, 1, 0
    %v1336 = vsel %vm1320, 1, 0
    %v1337 = vsel %vm1321, 1, 0
    %v1338 = vsel %vm1322, 1, 0
    %v1339 = vsel %vm1323, 1, 0
    %1340 = vset.pattern.permute.xlu0 0
    %1341 = vperm.xlu0 %1340, %v1324
    %v1342 = vpop.permute.xlu0 %1341
    %1343 = vset.pattern.permute.xlu0 0
    %1344 = vperm.xlu0 %1343, %v1325
    %v1345 = vpop.permute.xlu0 %1344
    %1346 = vset.pattern.permute.xlu0 0
    %1347 = vperm.xlu0 %1346, %v1326
    %v1348 = vpop.permute.xlu0 %1347
    %1349 = vset.pattern.permute.xlu0 0
    %1350 = vperm.xlu0 %1349, %v1327
    %v1351 = vpop.permute.xlu0 %1350
    %1352 = vset.pattern.permute.xlu0 0
    %1353 = vperm.xlu0 %1352, %v1328
    %v1354 = vpop.permute.xlu0 %1353
    %1355 = vset.pattern.permute.xlu0 0
    %1356 = vperm.xlu0 %1355, %v1329
    %v1357 = vpop.permute.xlu0 %1356
    %1358 = vset.pattern.permute.xlu0 0
    %1359 = vperm.xlu0 %1358, %v1330
    %v1360 = vpop.permute.xlu0 %1359
    %1361 = vset.pattern.permute.xlu0 0
    %1362 = vperm.xlu0 %1361, %v1331
    %v1363 = vpop.permute.xlu0 %1362
    %1364 = vset.pattern.permute.xlu0 0
    %1365 = vperm.xlu0 %1364, %v1332
    %v1366 = vpop.permute.xlu0 %1365
    %1367 = vset.pattern.permute.xlu0 0
    %1368 = vperm.xlu0 %1367, %v1333
    %v1369 = vpop.permute.xlu0 %1368
    %1370 = vset.pattern.permute.xlu0 0
    %1371 = vperm.xlu0 %1370, %v1334
    %v1372 = vpop.permute.xlu0 %1371
    %1373 = vset.pattern.permute.xlu0 0
    %1374 = vperm.xlu0 %1373, %v1335
    %v1375 = vpop.permute.xlu0 %1374
    %1376 = vset.pattern.permute.xlu0 0
    %1377 = vperm.xlu0 %1376, %v1336
    %v1378 = vpop.permute.xlu0 %1377
    %1379 = vset.pattern.permute.xlu0 0
    %1380 = vperm.xlu0 %1379, %v1337
    %v1381 = vpop.permute.xlu0 %1380
    %1382 = vset.pattern.permute.xlu0 0
    %1383 = vperm.xlu0 %1382, %v1338
    %v1384 = vpop.permute.xlu0 %1383
    %1385 = vset.pattern.permute.xlu0 0
    %1386 = vperm.xlu0 %1385, %v1339
    %v1387 = vpop.permute.xlu0 %1386
    %vm1388 = vcmp.eq.s32.totalorder %v1342, 1
    %vm1389 = vcmp.eq.s32.totalorder %v1345, 1
    %vm1390 = vcmp.eq.s32.totalorder %v1348, 1
    %vm1391 = vcmp.eq.s32.totalorder %v1351, 1
    %vm1392 = vcmp.eq.s32.totalorder %v1354, 1
    %vm1393 = vcmp.eq.s32.totalorder %v1357, 1
    %vm1394 = vcmp.eq.s32.totalorder %v1360, 1
    %vm1395 = vcmp.eq.s32.totalorder %v1363, 1
    %vm1396 = vcmp.eq.s32.totalorder %v1366, 1
    %vm1397 = vcmp.eq.s32.totalorder %v1369, 1
    %vm1398 = vcmp.eq.s32.totalorder %v1372, 1
    %vm1399 = vcmp.eq.s32.totalorder %v1375, 1
    %vm1400 = vcmp.eq.s32.totalorder %v1378, 1
    %vm1401 = vcmp.eq.s32.totalorder %v1381, 1
    %vm1402 = vcmp.eq.s32.totalorder %v1384, 1
    %vm1403 = vcmp.eq.s32.totalorder %v1387, 1
    %v1404 = vsel %vm1388, %v1292, 0.0
    %v1405 = vsel %vm1389, %v1293, 0.0
    %v1406 = vsel %vm1390, %v1294, 0.0
    %v1407 = vsel %vm1391, %v1295, 0.0
    %v1408 = vsel %vm1392, %v1296, 0.0
    %v1409 = vsel %vm1393, %v1297, 0.0
    %v1410 = vsel %vm1394, %v1298, 0.0
    %v1411 = vsel %vm1395, %v1299, 0.0
    %v1412 = vsel %vm1396, %v1300, 0.0
    %v1413 = vsel %vm1397, %v1301, 0.0
    %v1414 = vsel %vm1398, %v1302, 0.0
    %v1415 = vsel %vm1399, %v1303, 0.0
    %v1416 = vsel %vm1400, %v1304, 0.0
    %v1417 = vsel %vm1401, %v1305, 0.0
    %v1418 = vsel %vm1402, %v1306, 0.0
    %v1419 = vsel %vm1403, %v1307, 0.0
    %v1420 = vadd.f32 %v1404, %v1405
    %v1421 = vadd.f32 %v1420, %v1406
    %v1422 = vadd.f32 %v1421, %v1407
    %v1423 = vadd.f32 %v1422, %v1408
    %v1424 = vadd.f32 %v1423, %v1409
    %v1425 = vadd.f32 %v1424, %v1410
    %v1426 = vadd.f32 %v1425, %v1411
    %v1427 = vadd.f32 %v1426, %v1412
    %v1428 = vadd.f32 %v1427, %v1413
    %v1429 = vadd.f32 %v1428, %v1414
    %v1430 = vadd.f32 %v1429, %v1415
    %v1431 = vadd.f32 %v1430, %v1416
    %v1432 = vadd.f32 %v1431, %v1417
    %v1433 = vadd.f32 %v1432, %v1418
    %v1434 = vadd.f32 %v1433, %v1419
    %v1435 = vrot.slane %v1434, 4
    %v1436 = vadd.f32 %v1434, %v1435
    %v1437 = vrot.slane %v1436, 2
    %v1438 = vadd.f32 %v1436, %v1437
    %v1439 = vrot.slane %v1438, 1
    %v1440 = vadd.f32 %v1438, %v1439
    %v1441 = vadd.f32 %v1440, 0.0
    %vm1442 = vcmp.eq.f32.partialorder %v112, 1.0
    %vm1443 = vcmp.eq.f32.partialorder %v113, 1.0
    %vm1444 = vcmp.eq.f32.partialorder %v114, 1.0
    %vm1445 = vcmp.eq.f32.partialorder %v115, 1.0
    %vm1446 = vcmp.eq.f32.partialorder %v116, 1.0
    %vm1447 = vcmp.eq.f32.partialorder %v117, 1.0
    %vm1448 = vcmp.eq.f32.partialorder %v118, 1.0
    %vm1449 = vcmp.eq.f32.partialorder %v119, 1.0
    %vm1450 = vcmp.eq.f32.partialorder %v120, 1.0
    %vm1451 = vcmp.eq.f32.partialorder %v121, 1.0
    %vm1452 = vcmp.eq.f32.partialorder %v122, 1.0
    %vm1453 = vcmp.eq.f32.partialorder %v123, 1.0
    %vm1454 = vcmp.eq.f32.partialorder %v124, 1.0
    %vm1455 = vcmp.eq.f32.partialorder %v125, 1.0
    %vm1456 = vcmp.eq.f32.partialorder %v126, 1.0
    %vm1457 = vcmp.eq.f32.partialorder %v127, 1.0
    %v1458 = vsel %vm1442, 1, 0
    %v1459 = vsel %vm1443, 1, 0
    %v1460 = vsel %vm1444, 1, 0
    %v1461 = vsel %vm1445, 1, 0
    %v1462 = vsel %vm1446, 1, 0
    %v1463 = vsel %vm1447, 1, 0
    %v1464 = vsel %vm1448, 1, 0
    %v1465 = vsel %vm1449, 1, 0
    %v1466 = vsel %vm1450, 1, 0
    %v1467 = vsel %vm1451, 1, 0
    %v1468 = vsel %vm1452, 1, 0
    %v1469 = vsel %vm1453, 1, 0
    %v1470 = vsel %vm1454, 1, 0
    %v1471 = vsel %vm1455, 1, 0
    %v1472 = vsel %vm1456, 1, 0
    %v1473 = vsel %vm1457, 1, 0
    %1474 = vset.pattern.permute.xlu0 0
    %1475 = vperm.xlu0 %1474, %v1458
    %v1476 = vpop.permute.xlu0 %1475
    %1477 = vset.pattern.permute.xlu0 0
    %1478 = vperm.xlu0 %1477, %v1459
    %v1479 = vpop.permute.xlu0 %1478
    %1480 = vset.pattern.permute.xlu0 0
    %1481 = vperm.xlu0 %1480, %v1460
    %v1482 = vpop.permute.xlu0 %1481
    %1483 = vset.pattern.permute.xlu0 0
    %1484 = vperm.xlu0 %1483, %v1461
    %v1485 = vpop.permute.xlu0 %1484
    %1486 = vset.pattern.permute.xlu0 0
    %1487 = vperm.xlu0 %1486, %v1462
    %v1488 = vpop.permute.xlu0 %1487
    %1489 = vset.pattern.permute.xlu0 0
    %1490 = vperm.xlu0 %1489, %v1463
    %v1491 = vpop.permute.xlu0 %1490
    %1492 = vset.pattern.permute.xlu0 0
    %1493 = vperm.xlu0 %1492, %v1464
    %v1494 = vpop.permute.xlu0 %1493
    %1495 = vset.pattern.permute.xlu0 0
    %1496 = vperm.xlu0 %1495, %v1465
    %v1497 = vpop.permute.xlu0 %1496
    %1498 = vset.pattern.permute.xlu0 0
    %1499 = vperm.xlu0 %1498, %v1466
    %v1500 = vpop.permute.xlu0 %1499
    %1501 = vset.pattern.permute.xlu0 0
    %1502 = vperm.xlu0 %1501, %v1467
    %v1503 = vpop.permute.xlu0 %1502
    %1504 = vset.pattern.permute.xlu0 0
    %1505 = vperm.xlu0 %1504, %v1468
    %v1506 = vpop.permute.xlu0 %1505
    %1507 = vset.pattern.permute.xlu0 0
    %1508 = vperm.xlu0 %1507, %v1469
    %v1509 = vpop.permute.xlu0 %1508
    %1510 = vset.pattern.permute.xlu0 0
    %1511 = vperm.xlu0 %1510, %v1470
    %v1512 = vpop.permute.xlu0 %1511
    %1513 = vset.pattern.permute.xlu0 0
    %1514 = vperm.xlu0 %1513, %v1471
    %v1515 = vpop.permute.xlu0 %1514
    %1516 = vset.pattern.permute.xlu0 0
    %1517 = vperm.xlu0 %1516, %v1472
    %v1518 = vpop.permute.xlu0 %1517
    %1519 = vset.pattern.permute.xlu0 0
    %1520 = vperm.xlu0 %1519, %v1473
    %v1521 = vpop.permute.xlu0 %1520
    %vm1522 = vcmp.eq.s32.totalorder %v1476, 1
    %vm1523 = vcmp.eq.s32.totalorder %v1479, 1
    %vm1524 = vcmp.eq.s32.totalorder %v1482, 1
    %vm1525 = vcmp.eq.s32.totalorder %v1485, 1
    %vm1526 = vcmp.eq.s32.totalorder %v1488, 1
    %vm1527 = vcmp.eq.s32.totalorder %v1491, 1
    %vm1528 = vcmp.eq.s32.totalorder %v1494, 1
    %vm1529 = vcmp.eq.s32.totalorder %v1497, 1
    %vm1530 = vcmp.eq.s32.totalorder %v1500, 1
    %vm1531 = vcmp.eq.s32.totalorder %v1503, 1
    %vm1532 = vcmp.eq.s32.totalorder %v1506, 1
    %vm1533 = vcmp.eq.s32.totalorder %v1509, 1
    %vm1534 = vcmp.eq.s32.totalorder %v1512, 1
    %vm1535 = vcmp.eq.s32.totalorder %v1515, 1
    %vm1536 = vcmp.eq.s32.totalorder %v1518, 1
    %vm1537 = vcmp.eq.s32.totalorder %v1521, 1
    %v1538 = vsel %vm1522, %v1292, 0.0
    %v1539 = vsel %vm1523, %v1293, 0.0
    %v1540 = vsel %vm1524, %v1294, 0.0
    %v1541 = vsel %vm1525, %v1295, 0.0
    %v1542 = vsel %vm1526, %v1296, 0.0
    %v1543 = vsel %vm1527, %v1297, 0.0
    %v1544 = vsel %vm1528, %v1298, 0.0
    %v1545 = vsel %vm1529, %v1299, 0.0
    %v1546 = vsel %vm1530, %v1300, 0.0
    %v1547 = vsel %vm1531, %v1301, 0.0
    %v1548 = vsel %vm1532, %v1302, 0.0
    %v1549 = vsel %vm1533, %v1303, 0.0
    %v1550 = vsel %vm1534, %v1304, 0.0
    %v1551 = vsel %vm1535, %v1305, 0.0
    %v1552 = vsel %vm1536, %v1306, 0.0
    %v1553 = vsel %vm1537, %v1307, 0.0
    %v1554 = vadd.f32 %v1538, %v1539
    %v1555 = vadd.f32 %v1554, %v1540
    %v1556 = vadd.f32 %v1555, %v1541
    %v1557 = vadd.f32 %v1556, %v1542
    %v1558 = vadd.f32 %v1557, %v1543
    %v1559 = vadd.f32 %v1558, %v1544
    %v1560 = vadd.f32 %v1559, %v1545
    %v1561 = vadd.f32 %v1560, %v1546
    %v1562 = vadd.f32 %v1561, %v1547
    %v1563 = vadd.f32 %v1562, %v1548
    %v1564 = vadd.f32 %v1563, %v1549
    %v1565 = vadd.f32 %v1564, %v1550
    %v1566 = vadd.f32 %v1565, %v1551
    %v1567 = vadd.f32 %v1566, %v1552
    %v1568 = vadd.f32 %v1567, %v1553
    %v1569 = vrot.slane %v1568, 4
    %v1570 = vadd.f32 %v1568, %v1569
    %v1571 = vrot.slane %v1570, 2
    %v1572 = vadd.f32 %v1570, %v1571
    %v1573 = vrot.slane %v1572, 1
    %v1574 = vadd.f32 %v1572, %v1573
    %v1575 = vadd.f32 %v1574, 0.0
    %s1576 = scalar_lea.vmem %s0, 128
    %v1577 = vld [vmem:[%s1576] sm:$0xff]
    %v1578 = vld [vmem:[%s1576 + $0x8] sm:$0xff]
    %v1579 = vld [vmem:[%s1576 + $0x10] sm:$0xff]
    %v1580 = vld [vmem:[%s1576 + $0x18] sm:$0xff]
    %v1581 = vld [vmem:[%s1576 + $0x20] sm:$0xff]
    %v1582 = vld [vmem:[%s1576 + $0x28] sm:$0xff]
    %v1583 = vld [vmem:[%s1576 + $0x30] sm:$0xff]
    %v1584 = vld [vmem:[%s1576 + $0x38] sm:$0xff]
    %v1585 = vld [vmem:[%s1576 + $0x40] sm:$0xff]
    %v1586 = vld [vmem:[%s1576 + $0x48] sm:$0xff]
    %v1587 = vld [vmem:[%s1576 + $0x50] sm:$0xff]
    %v1588 = vld [vmem:[%s1576 + $0x58] sm:$0xff]
    %v1589 = vld [vmem:[%s1576 + $0x60] sm:$0xff]
    %v1590 = vld [vmem:[%s1576 + $0x68] sm:$0xff]
    %v1591 = vld [vmem:[%s1576 + $0x70] sm:$0xff]
    %v1592 = vld [vmem:[%s1576 + $0x78] sm:$0xff]
    %1594 = vset.pattern.permute.xlu0 1
    %1595 = vperm.xlu0 %1594, %v1577
    %v1596 = vpop.permute.xlu0 %1595
    %1599 = vset.pattern.permute.xlu0 1
    %1600 = vperm.xlu0 %1599, %v1578
    %v1601 = vpop.permute.xlu0 %1600
    %1604 = vset.pattern.permute.xlu0 1
    %1605 = vperm.xlu0 %1604, %v1579
    %v1606 = vpop.permute.xlu0 %1605
    %1609 = vset.pattern.permute.xlu0 1
    %1610 = vperm.xlu0 %1609, %v1580
    %v1611 = vpop.permute.xlu0 %1610
    %1614 = vset.pattern.permute.xlu0 1
    %1615 = vperm.xlu0 %1614, %v1581
    %v1616 = vpop.permute.xlu0 %1615
    %1619 = vset.pattern.permute.xlu0 1
    %1620 = vperm.xlu0 %1619, %v1582
    %v1621 = vpop.permute.xlu0 %1620
    %1624 = vset.pattern.permute.xlu0 1
    %1625 = vperm.xlu0 %1624, %v1583
    %v1626 = vpop.permute.xlu0 %1625
    %1629 = vset.pattern.permute.xlu0 1
    %1630 = vperm.xlu0 %1629, %v1584
    %v1631 = vpop.permute.xlu0 %1630
    %1634 = vset.pattern.permute.xlu0 1
    %1635 = vperm.xlu0 %1634, %v1585
    %v1636 = vpop.permute.xlu0 %1635
    %1639 = vset.pattern.permute.xlu0 1
    %1640 = vperm.xlu0 %1639, %v1586
    %v1641 = vpop.permute.xlu0 %1640
    %1644 = vset.pattern.permute.xlu0 1
    %1645 = vperm.xlu0 %1644, %v1587
    %v1646 = vpop.permute.xlu0 %1645
    %1649 = vset.pattern.permute.xlu0 1
    %1650 = vperm.xlu0 %1649, %v1588
    %v1651 = vpop.permute.xlu0 %1650
    %1654 = vset.pattern.permute.xlu0 1
    %1655 = vperm.xlu0 %1654, %v1589
    %v1656 = vpop.permute.xlu0 %1655
    %1659 = vset.pattern.permute.xlu0 1
    %1660 = vperm.xlu0 %1659, %v1590
    %v1661 = vpop.permute.xlu0 %1660
    %1664 = vset.pattern.permute.xlu0 1
    %1665 = vperm.xlu0 %1664, %v1591
    %v1666 = vpop.permute.xlu0 %1665
    %1669 = vset.pattern.permute.xlu0 1
    %1670 = vperm.xlu0 %1669, %v1592
    %v1671 = vpop.permute.xlu0 %1670
    %v1673 = vmul.f32 %v1596, %v211
    %v1674 = vmul.f32 %v1601, %v211
    %v1675 = vmul.f32 %v1606, %v211
    %v1676 = vmul.f32 %v1611, %v211
    %v1677 = vmul.f32 %v1616, %v211
    %v1678 = vmul.f32 %v1621, %v211
    %v1679 = vmul.f32 %v1626, %v211
    %v1680 = vmul.f32 %v1631, %v211
    %v1681 = vmul.f32 %v1636, %v211
    %v1682 = vmul.f32 %v1641, %v211
    %v1683 = vmul.f32 %v1646, %v211
    %v1684 = vmul.f32 %v1651, %v211
    %v1685 = vmul.f32 %v1656, %v211
    %v1686 = vmul.f32 %v1661, %v211
    %v1687 = vmul.f32 %v1666, %v211
    %v1688 = vmul.f32 %v1671, %v211
    %1689 = vset.pattern.permute.xlu0 2
    %1690 = vperm.xlu0 %1689, %v1577
    %v1691 = vpop.permute.xlu0 %1690
    %1693 = vset.pattern.permute.xlu0 2
    %1694 = vperm.xlu0 %1693, %v1578
    %v1695 = vpop.permute.xlu0 %1694
    %1697 = vset.pattern.permute.xlu0 2
    %1698 = vperm.xlu0 %1697, %v1579
    %v1699 = vpop.permute.xlu0 %1698
    %1701 = vset.pattern.permute.xlu0 2
    %1702 = vperm.xlu0 %1701, %v1580
    %v1703 = vpop.permute.xlu0 %1702
    %1705 = vset.pattern.permute.xlu0 2
    %1706 = vperm.xlu0 %1705, %v1581
    %v1707 = vpop.permute.xlu0 %1706
    %1709 = vset.pattern.permute.xlu0 2
    %1710 = vperm.xlu0 %1709, %v1582
    %v1711 = vpop.permute.xlu0 %1710
    %1713 = vset.pattern.permute.xlu0 2
    %1714 = vperm.xlu0 %1713, %v1583
    %v1715 = vpop.permute.xlu0 %1714
    %1717 = vset.pattern.permute.xlu0 2
    %1718 = vperm.xlu0 %1717, %v1584
    %v1719 = vpop.permute.xlu0 %1718
    %1721 = vset.pattern.permute.xlu0 2
    %1722 = vperm.xlu0 %1721, %v1585
    %v1723 = vpop.permute.xlu0 %1722
    %1725 = vset.pattern.permute.xlu0 2
    %1726 = vperm.xlu0 %1725, %v1586
    %v1727 = vpop.permute.xlu0 %1726
    %1729 = vset.pattern.permute.xlu0 2
    %1730 = vperm.xlu0 %1729, %v1587
    %v1731 = vpop.permute.xlu0 %1730
    %1733 = vset.pattern.permute.xlu0 2
    %1734 = vperm.xlu0 %1733, %v1588
    %v1735 = vpop.permute.xlu0 %1734
    %1737 = vset.pattern.permute.xlu0 2
    %1738 = vperm.xlu0 %1737, %v1589
    %v1739 = vpop.permute.xlu0 %1738
    %1741 = vset.pattern.permute.xlu0 2
    %1742 = vperm.xlu0 %1741, %v1590
    %v1743 = vpop.permute.xlu0 %1742
    %1745 = vset.pattern.permute.xlu0 2
    %1746 = vperm.xlu0 %1745, %v1591
    %v1747 = vpop.permute.xlu0 %1746
    %1749 = vset.pattern.permute.xlu0 2
    %1750 = vperm.xlu0 %1749, %v1592
    %v1751 = vpop.permute.xlu0 %1750
    %v1753 = vmul.f32 %v1691, %v295
    %v1754 = vmul.f32 %v1695, %v295
    %v1755 = vmul.f32 %v1699, %v295
    %v1756 = vmul.f32 %v1703, %v295
    %v1757 = vmul.f32 %v1707, %v295
    %v1758 = vmul.f32 %v1711, %v295
    %v1759 = vmul.f32 %v1715, %v295
    %v1760 = vmul.f32 %v1719, %v295
    %v1761 = vmul.f32 %v1723, %v295
    %v1762 = vmul.f32 %v1727, %v295
    %v1763 = vmul.f32 %v1731, %v295
    %v1764 = vmul.f32 %v1735, %v295
    %v1765 = vmul.f32 %v1739, %v295
    %v1766 = vmul.f32 %v1743, %v295
    %v1767 = vmul.f32 %v1747, %v295
    %v1768 = vmul.f32 %v1751, %v295
    %v1769 = vadd.f32 %v1673, %v1753
    %v1770 = vadd.f32 %v1674, %v1754
    %v1771 = vadd.f32 %v1675, %v1755
    %v1772 = vadd.f32 %v1676, %v1756
    %v1773 = vadd.f32 %v1677, %v1757
    %v1774 = vadd.f32 %v1678, %v1758
    %v1775 = vadd.f32 %v1679, %v1759
    %v1776 = vadd.f32 %v1680, %v1760
    %v1777 = vadd.f32 %v1681, %v1761
    %v1778 = vadd.f32 %v1682, %v1762
    %v1779 = vadd.f32 %v1683, %v1763
    %v1780 = vadd.f32 %v1684, %v1764
    %v1781 = vadd.f32 %v1685, %v1765
    %v1782 = vadd.f32 %v1686, %v1766
    %v1783 = vadd.f32 %v1687, %v1767
    %v1784 = vadd.f32 %v1688, %v1768
    %1785 = vset.pattern.permute.xlu0 3
    %1786 = vperm.xlu0 %1785, %v1577
    %v1787 = vpop.permute.xlu0 %1786
    %1789 = vset.pattern.permute.xlu0 3
    %1790 = vperm.xlu0 %1789, %v1578
    %v1791 = vpop.permute.xlu0 %1790
    %1793 = vset.pattern.permute.xlu0 3
    %1794 = vperm.xlu0 %1793, %v1579
    %v1795 = vpop.permute.xlu0 %1794
    %1797 = vset.pattern.permute.xlu0 3
    %1798 = vperm.xlu0 %1797, %v1580
    %v1799 = vpop.permute.xlu0 %1798
    %1801 = vset.pattern.permute.xlu0 3
    %1802 = vperm.xlu0 %1801, %v1581
    %v1803 = vpop.permute.xlu0 %1802
    %1805 = vset.pattern.permute.xlu0 3
    %1806 = vperm.xlu0 %1805, %v1582
    %v1807 = vpop.permute.xlu0 %1806
    %1809 = vset.pattern.permute.xlu0 3
    %1810 = vperm.xlu0 %1809, %v1583
    %v1811 = vpop.permute.xlu0 %1810
    %1813 = vset.pattern.permute.xlu0 3
    %1814 = vperm.xlu0 %1813, %v1584
    %v1815 = vpop.permute.xlu0 %1814
    %1817 = vset.pattern.permute.xlu0 3
    %1818 = vperm.xlu0 %1817, %v1585
    %v1819 = vpop.permute.xlu0 %1818
    %1821 = vset.pattern.permute.xlu0 3
    %1822 = vperm.xlu0 %1821, %v1586
    %v1823 = vpop.permute.xlu0 %1822
    %1825 = vset.pattern.permute.xlu0 3
    %1826 = vperm.xlu0 %1825, %v1587
    %v1827 = vpop.permute.xlu0 %1826
    %1829 = vset.pattern.permute.xlu0 3
    %1830 = vperm.xlu0 %1829, %v1588
    %v1831 = vpop.permute.xlu0 %1830
    %1833 = vset.pattern.permute.xlu0 3
    %1834 = vperm.xlu0 %1833, %v1589
    %v1835 = vpop.permute.xlu0 %1834
    %1837 = vset.pattern.permute.xlu0 3
    %1838 = vperm.xlu0 %1837, %v1590
    %v1839 = vpop.permute.xlu0 %1838
    %1841 = vset.pattern.permute.xlu0 3
    %1842 = vperm.xlu0 %1841, %v1591
    %v1843 = vpop.permute.xlu0 %1842
    %1845 = vset.pattern.permute.xlu0 3
    %1846 = vperm.xlu0 %1845, %v1592
    %v1847 = vpop.permute.xlu0 %1846
    %v1849 = vmul.f32 %v1787, %v395
    %v1850 = vmul.f32 %v1791, %v395
    %v1851 = vmul.f32 %v1795, %v395
    %v1852 = vmul.f32 %v1799, %v395
    %v1853 = vmul.f32 %v1803, %v395
    %v1854 = vmul.f32 %v1807, %v395
    %v1855 = vmul.f32 %v1811, %v395
    %v1856 = vmul.f32 %v1815, %v395
    %v1857 = vmul.f32 %v1819, %v395
    %v1858 = vmul.f32 %v1823, %v395
    %v1859 = vmul.f32 %v1827, %v395
    %v1860 = vmul.f32 %v1831, %v395
    %v1861 = vmul.f32 %v1835, %v395
    %v1862 = vmul.f32 %v1839, %v395
    %v1863 = vmul.f32 %v1843, %v395
    %v1864 = vmul.f32 %v1847, %v395
    %v1865 = vadd.f32 %v1769, %v1849
    %v1866 = vadd.f32 %v1770, %v1850
    %v1867 = vadd.f32 %v1771, %v1851
    %v1868 = vadd.f32 %v1772, %v1852
    %v1869 = vadd.f32 %v1773, %v1853
    %v1870 = vadd.f32 %v1774, %v1854
    %v1871 = vadd.f32 %v1775, %v1855
    %v1872 = vadd.f32 %v1776, %v1856
    %v1873 = vadd.f32 %v1777, %v1857
    %v1874 = vadd.f32 %v1778, %v1858
    %v1875 = vadd.f32 %v1779, %v1859
    %v1876 = vadd.f32 %v1780, %v1860
    %v1877 = vadd.f32 %v1781, %v1861
    %v1878 = vadd.f32 %v1782, %v1862
    %v1879 = vadd.f32 %v1783, %v1863
    %v1880 = vadd.f32 %v1784, %v1864
    %1881 = vset.pattern.permute.xlu0 4
    %1882 = vperm.xlu0 %1881, %v1577
    %v1883 = vpop.permute.xlu0 %1882
    %1885 = vset.pattern.permute.xlu0 4
    %1886 = vperm.xlu0 %1885, %v1578
    %v1887 = vpop.permute.xlu0 %1886
    %1889 = vset.pattern.permute.xlu0 4
    %1890 = vperm.xlu0 %1889, %v1579
    %v1891 = vpop.permute.xlu0 %1890
    %1893 = vset.pattern.permute.xlu0 4
    %1894 = vperm.xlu0 %1893, %v1580
    %v1895 = vpop.permute.xlu0 %1894
    %1897 = vset.pattern.permute.xlu0 4
    %1898 = vperm.xlu0 %1897, %v1581
    %v1899 = vpop.permute.xlu0 %1898
    %1901 = vset.pattern.permute.xlu0 4
    %1902 = vperm.xlu0 %1901, %v1582
    %v1903 = vpop.permute.xlu0 %1902
    %1905 = vset.pattern.permute.xlu0 4
    %1906 = vperm.xlu0 %1905, %v1583
    %v1907 = vpop.permute.xlu0 %1906
    %1909 = vset.pattern.permute.xlu0 4
    %1910 = vperm.xlu0 %1909, %v1584
    %v1911 = vpop.permute.xlu0 %1910
    %1913 = vset.pattern.permute.xlu0 4
    %1914 = vperm.xlu0 %1913, %v1585
    %v1915 = vpop.permute.xlu0 %1914
    %1917 = vset.pattern.permute.xlu0 4
    %1918 = vperm.xlu0 %1917, %v1586
    %v1919 = vpop.permute.xlu0 %1918
    %1921 = vset.pattern.permute.xlu0 4
    %1922 = vperm.xlu0 %1921, %v1587
    %v1923 = vpop.permute.xlu0 %1922
    %1925 = vset.pattern.permute.xlu0 4
    %1926 = vperm.xlu0 %1925, %v1588
    %v1927 = vpop.permute.xlu0 %1926
    %1929 = vset.pattern.permute.xlu0 4
    %1930 = vperm.xlu0 %1929, %v1589
    %v1931 = vpop.permute.xlu0 %1930
    %1933 = vset.pattern.permute.xlu0 4
    %1934 = vperm.xlu0 %1933, %v1590
    %v1935 = vpop.permute.xlu0 %1934
    %1937 = vset.pattern.permute.xlu0 4
    %1938 = vperm.xlu0 %1937, %v1591
    %v1939 = vpop.permute.xlu0 %1938
    %1941 = vset.pattern.permute.xlu0 4
    %1942 = vperm.xlu0 %1941, %v1592
    %v1943 = vpop.permute.xlu0 %1942
    %v1945 = vmul.f32 %v1883, %v495
    %v1946 = vmul.f32 %v1887, %v495
    %v1947 = vmul.f32 %v1891, %v495
    %v1948 = vmul.f32 %v1895, %v495
    %v1949 = vmul.f32 %v1899, %v495
    %v1950 = vmul.f32 %v1903, %v495
    %v1951 = vmul.f32 %v1907, %v495
    %v1952 = vmul.f32 %v1911, %v495
    %v1953 = vmul.f32 %v1915, %v495
    %v1954 = vmul.f32 %v1919, %v495
    %v1955 = vmul.f32 %v1923, %v495
    %v1956 = vmul.f32 %v1927, %v495
    %v1957 = vmul.f32 %v1931, %v495
    %v1958 = vmul.f32 %v1935, %v495
    %v1959 = vmul.f32 %v1939, %v495
    %v1960 = vmul.f32 %v1943, %v495
    %v1961 = vadd.f32 %v1865, %v1945
    %v1962 = vadd.f32 %v1866, %v1946
    %v1963 = vadd.f32 %v1867, %v1947
    %v1964 = vadd.f32 %v1868, %v1948
    %v1965 = vadd.f32 %v1869, %v1949
    %v1966 = vadd.f32 %v1870, %v1950
    %v1967 = vadd.f32 %v1871, %v1951
    %v1968 = vadd.f32 %v1872, %v1952
    %v1969 = vadd.f32 %v1873, %v1953
    %v1970 = vadd.f32 %v1874, %v1954
    %v1971 = vadd.f32 %v1875, %v1955
    %v1972 = vadd.f32 %v1876, %v1956
    %v1973 = vadd.f32 %v1877, %v1957
    %v1974 = vadd.f32 %v1878, %v1958
    %v1975 = vadd.f32 %v1879, %v1959
    %v1976 = vadd.f32 %v1880, %v1960
    %v1977 = vadd.f32 %v1961, %v531
    %v1978 = vadd.f32 %v1962, %v531
    %v1979 = vadd.f32 %v1963, %v531
    %v1980 = vadd.f32 %v1964, %v531
    %v1981 = vadd.f32 %v1965, %v531
    %v1982 = vadd.f32 %v1966, %v531
    %v1983 = vadd.f32 %v1967, %v531
    %v1984 = vadd.f32 %v1968, %v531
    %v1985 = vadd.f32 %v1969, %v531
    %v1986 = vadd.f32 %v1970, %v531
    %v1987 = vadd.f32 %v1971, %v531
    %v1988 = vadd.f32 %v1972, %v531
    %v1989 = vadd.f32 %v1973, %v531
    %v1990 = vadd.f32 %v1974, %v531
    %v1991 = vadd.f32 %v1975, %v531
    %v1992 = vadd.f32 %v1976, %v531
    %v1993 = vmax.f32 %v1977, 0.0
    %v1994 = vmax.f32 %v1978, 0.0
    %v1995 = vmax.f32 %v1979, 0.0
    %v1996 = vmax.f32 %v1980, 0.0
    %v1997 = vmax.f32 %v1981, 0.0
    %v1998 = vmax.f32 %v1982, 0.0
    %v1999 = vmax.f32 %v1983, 0.0
    %v2000 = vmax.f32 %v1984, 0.0
    %v2001 = vmax.f32 %v1985, 0.0
    %v2002 = vmax.f32 %v1986, 0.0
    %v2003 = vmax.f32 %v1987, 0.0
    %v2004 = vmax.f32 %v1988, 0.0
    %v2005 = vmax.f32 %v1989, 0.0
    %v2006 = vmax.f32 %v1990, 0.0
    %v2007 = vmax.f32 %v1991, 0.0
    %v2008 = vmax.f32 %v1992, 0.0
    %v2009 = vpack.c.bf16 %v1994, %v1993
    %v2010 = vpack.c.bf16 %v1996, %v1995
    %v2011 = vpack.c.bf16 %v1998, %v1997
    %v2012 = vpack.c.bf16 %v2000, %v1999
    %v2013 = vpack.c.bf16 %v2002, %v2001
    %v2014 = vpack.c.bf16 %v2004, %v2003
    %v2015 = vpack.c.bf16 %v2006, %v2005
    %v2016 = vpack.c.bf16 %v2008, %v2007
    %2017 = vmatprep.subr.bf16.mxu0 0
    %2018 = vmatpush1.bf16.msra.mxu0 %v615
    %2019 = vmatprep.subr.bf16.mxu0 0
    %2020 = vmatpush1.bf16.msra.mxu0 %v614
    %2021 = vmatprep.subr.bf16.mxu0 0
    %2022 = vmatpush1.bf16.msra.mxu0 %v613
    %2023 = vmatprep.subr.bf16.mxu0 0
    %2024 = vmatpush1.bf16.msra.mxu0 %v612
    %2025 = vmatprep.subr.bf16.mxu0 0
    %2026 = vmatpush1.bf16.msra.mxu0 %v611
    %2027 = vmatprep.subr.bf16.mxu0 0
    %2028 = vmatpush1.bf16.msra.mxu0 %v610
    %2029 = vmatprep.subr.bf16.mxu0 0
    %2030 = vmatpush1.bf16.msra.mxu0 %v609
    %2031 = vmatprep.subr.bf16.mxu0 0
    %2032 = vmatpush1.bf16.msra.mxu0 %v608
    %2033 = vmatprep.subr.bf16.mxu0 0
    %2034 = vmatpush2.bf16.msra.mxu0 0
    %2035 = vmatprep.subr.bf16.mxu0 0
    %2036 = vmatpush2.bf16.msra.mxu0 0
    %2037 = vmatprep.subr.bf16.mxu0 0
    %2038 = vmatpush2.bf16.msra.mxu0 0
    %2039 = vmatprep.subr.bf16.mxu0 0
    %2040 = vmatpush2.bf16.msra.mxu0 0
    %2041 = vmatprep.subr.bf16.mxu0 0
    %2042 = vmatpush2.bf16.msra.mxu0 0
    %2043 = vmatprep.subr.bf16.mxu0 0
    %2044 = vmatpush2.bf16.msra.mxu0 0
    %2045 = vmatprep.subr.bf16.mxu0 0
    %2046 = vmatpush2.bf16.msra.mxu0 0
    %2047 = vmatprep.subr.bf16.mxu0 0
    %2048 = vmatpush2.bf16.msra.mxu0 0
    %2049 = vmatprep.mubr.bf16.mxu0 0
    %2050 = vmatmul.mubr.bf16.gmra.mxu0 %v2009
    %v2051 = vpop.f32.mrf.mxu0
    %v2052 = vadd.f32 %v575, %v2051
    %v2053 = vpop.f32.mrf.mxu0
    %v2054 = vpop.f32.mrf.mxu0
    %v2055 = vadd.f32 %v575, %v2054
    %v2056 = vpop.f32.mrf.mxu0
    %2057 = vmatprep.mubr.bf16.mxu0 0
    %2058 = vmatmul.mubr.bf16.gmra.mxu0 %v2010
    %v2059 = vpop.f32.mrf.mxu0
    %v2060 = vadd.f32 %v575, %v2059
    %v2061 = vpop.f32.mrf.mxu0
    %v2062 = vpop.f32.mrf.mxu0
    %v2063 = vadd.f32 %v575, %v2062
    %v2064 = vpop.f32.mrf.mxu0
    %2065 = vmatprep.mubr.bf16.mxu0 0
    %2066 = vmatmul.mubr.bf16.gmra.mxu0 %v2011
    %v2067 = vpop.f32.mrf.mxu0
    %v2068 = vadd.f32 %v575, %v2067
    %v2069 = vpop.f32.mrf.mxu0
    %v2070 = vpop.f32.mrf.mxu0
    %v2071 = vadd.f32 %v575, %v2070
    %v2072 = vpop.f32.mrf.mxu0
    %2073 = vmatprep.mubr.bf16.mxu0 0
    %2074 = vmatmul.mubr.bf16.gmra.mxu0 %v2012
    %v2075 = vpop.f32.mrf.mxu0
    %v2076 = vadd.f32 %v575, %v2075
    %v2077 = vpop.f32.mrf.mxu0
    %v2078 = vpop.f32.mrf.mxu0
    %v2079 = vadd.f32 %v575, %v2078
    %v2080 = vpop.f32.mrf.mxu0
    %2081 = vmatprep.mubr.bf16.mxu0 0
    %2082 = vmatmul.mubr.bf16.gmra.mxu0 %v2013
    %v2083 = vpop.f32.mrf.mxu0
    %v2084 = vadd.f32 %v575, %v2083
    %v2085 = vpop.f32.mrf.mxu0
    %v2086 = vpop.f32.mrf.mxu0
    %v2087 = vadd.f32 %v575, %v2086
    %v2088 = vpop.f32.mrf.mxu0
    %2089 = vmatprep.mubr.bf16.mxu0 0
    %2090 = vmatmul.mubr.bf16.gmra.mxu0 %v2014
    %v2091 = vpop.f32.mrf.mxu0
    %v2092 = vadd.f32 %v575, %v2091
    %v2093 = vpop.f32.mrf.mxu0
    %v2094 = vpop.f32.mrf.mxu0
    %v2095 = vadd.f32 %v575, %v2094
    %v2096 = vpop.f32.mrf.mxu0
    %2097 = vmatprep.mubr.bf16.mxu0 0
    %2098 = vmatmul.mubr.bf16.gmra.mxu0 %v2015
    %v2099 = vpop.f32.mrf.mxu0
    %v2100 = vadd.f32 %v575, %v2099
    %v2101 = vpop.f32.mrf.mxu0
    %v2102 = vpop.f32.mrf.mxu0
    %v2103 = vadd.f32 %v575, %v2102
    %v2104 = vpop.f32.mrf.mxu0
    %2105 = vmatprep.mubr.bf16.mxu0 0
    %2106 = vmatmul.mubr.bf16.gmra.mxu0 %v2016
    %v2107 = vpop.f32.mrf.mxu0
    %v2108 = vadd.f32 %v575, %v2107
    %v2109 = vpop.f32.mrf.mxu0
    %v2110 = vpop.f32.mrf.mxu0
    %v2111 = vadd.f32 %v575, %v2110
    %v2112 = vpop.f32.mrf.mxu0
    %2113 = vdwg.mxu0
    %v2114 = vmax.f32 %v2052, 0.0
    %v2115 = vmax.f32 %v2055, 0.0
    %v2116 = vmax.f32 %v2060, 0.0
    %v2117 = vmax.f32 %v2063, 0.0
    %v2118 = vmax.f32 %v2068, 0.0
    %v2119 = vmax.f32 %v2071, 0.0
    %v2120 = vmax.f32 %v2076, 0.0
    %v2121 = vmax.f32 %v2079, 0.0
    %v2122 = vmax.f32 %v2084, 0.0
    %v2123 = vmax.f32 %v2087, 0.0
    %v2124 = vmax.f32 %v2092, 0.0
    %v2125 = vmax.f32 %v2095, 0.0
    %v2126 = vmax.f32 %v2100, 0.0
    %v2127 = vmax.f32 %v2103, 0.0
    %v2128 = vmax.f32 %v2108, 0.0
    %v2129 = vmax.f32 %v2111, 0.0
    %v2130 = vpack.c.bf16 %v2115, %v2114
    %v2131 = vpack.c.bf16 %v2117, %v2116
    %v2132 = vpack.c.bf16 %v2119, %v2118
    %v2133 = vpack.c.bf16 %v2121, %v2120
    %v2134 = vpack.c.bf16 %v2123, %v2122
    %v2135 = vpack.c.bf16 %v2125, %v2124
    %v2136 = vpack.c.bf16 %v2127, %v2126
    %v2137 = vpack.c.bf16 %v2129, %v2128
    %2138 = vmatprep.subr.bf16.mxu0 0
    %2139 = vmatpush1.bf16.msra.mxu0 %v788
    %2140 = vmatprep.subr.bf16.mxu0 0
    %2141 = vmatpush1.bf16.msra.mxu0 %v787
    %2142 = vmatprep.subr.bf16.mxu0 0
    %2143 = vmatpush1.bf16.msra.mxu0 %v786
    %2144 = vmatprep.subr.bf16.mxu0 0
    %2145 = vmatpush1.bf16.msra.mxu0 %v785
    %2146 = vmatprep.subr.bf16.mxu0 0
    %2147 = vmatpush1.bf16.msra.mxu0 %v784
    %2148 = vmatprep.subr.bf16.mxu0 0
    %2149 = vmatpush1.bf16.msra.mxu0 %v783
    %2150 = vmatprep.subr.bf16.mxu0 0
    %2151 = vmatpush1.bf16.msra.mxu0 %v782
    %2152 = vmatprep.subr.bf16.mxu0 0
    %2153 = vmatpush1.bf16.msra.mxu0 %v781
    %2154 = vmatprep.subr.bf16.mxu0 0
    %2155 = vmatpush2.bf16.msra.mxu0 0
    %2156 = vmatprep.subr.bf16.mxu0 0
    %2157 = vmatpush2.bf16.msra.mxu0 0
    %2158 = vmatprep.subr.bf16.mxu0 0
    %2159 = vmatpush2.bf16.msra.mxu0 0
    %2160 = vmatprep.subr.bf16.mxu0 0
    %2161 = vmatpush2.bf16.msra.mxu0 0
    %2162 = vmatprep.subr.bf16.mxu0 0
    %2163 = vmatpush2.bf16.msra.mxu0 0
    %2164 = vmatprep.subr.bf16.mxu0 0
    %2165 = vmatpush2.bf16.msra.mxu0 0
    %2166 = vmatprep.subr.bf16.mxu0 0
    %2167 = vmatpush2.bf16.msra.mxu0 0
    %2168 = vmatprep.subr.bf16.mxu0 0
    %2169 = vmatpush2.bf16.msra.mxu0 0
    %2170 = vmatprep.mubr.bf16.mxu0 0
    %2171 = vmatmul.mubr.bf16.gmra.mxu0 %v2130
    %v2172 = vpop.f32.mrf.mxu0
    %v2173 = vadd.f32 %v748, %v2172
    %v2174 = vpop.f32.mrf.mxu0
    %v2175 = vpop.f32.mrf.mxu0
    %v2176 = vadd.f32 %v748, %v2175
    %v2177 = vpop.f32.mrf.mxu0
    %2178 = vmatprep.mubr.bf16.mxu0 0
    %2179 = vmatmul.mubr.bf16.gmra.mxu0 %v2131
    %v2180 = vpop.f32.mrf.mxu0
    %v2181 = vadd.f32 %v748, %v2180
    %v2182 = vpop.f32.mrf.mxu0
    %v2183 = vpop.f32.mrf.mxu0
    %v2184 = vadd.f32 %v748, %v2183
    %v2185 = vpop.f32.mrf.mxu0
    %2186 = vmatprep.mubr.bf16.mxu0 0
    %2187 = vmatmul.mubr.bf16.gmra.mxu0 %v2132
    %v2188 = vpop.f32.mrf.mxu0
    %v2189 = vadd.f32 %v748, %v2188
    %v2190 = vpop.f32.mrf.mxu0
    %v2191 = vpop.f32.mrf.mxu0
    %v2192 = vadd.f32 %v748, %v2191
    %v2193 = vpop.f32.mrf.mxu0
    %2194 = vmatprep.mubr.bf16.mxu0 0
    %2195 = vmatmul.mubr.bf16.gmra.mxu0 %v2133
    %v2196 = vpop.f32.mrf.mxu0
    %v2197 = vadd.f32 %v748, %v2196
    %v2198 = vpop.f32.mrf.mxu0
    %v2199 = vpop.f32.mrf.mxu0
    %v2200 = vadd.f32 %v748, %v2199
    %v2201 = vpop.f32.mrf.mxu0
    %2202 = vmatprep.mubr.bf16.mxu0 0
    %2203 = vmatmul.mubr.bf16.gmra.mxu0 %v2134
    %v2204 = vpop.f32.mrf.mxu0
    %v2205 = vadd.f32 %v748, %v2204
    %v2206 = vpop.f32.mrf.mxu0
    %v2207 = vpop.f32.mrf.mxu0
    %v2208 = vadd.f32 %v748, %v2207
    %v2209 = vpop.f32.mrf.mxu0
    %2210 = vmatprep.mubr.bf16.mxu0 0
    %2211 = vmatmul.mubr.bf16.gmra.mxu0 %v2135
    %v2212 = vpop.f32.mrf.mxu0
    %v2213 = vadd.f32 %v748, %v2212
    %v2214 = vpop.f32.mrf.mxu0
    %v2215 = vpop.f32.mrf.mxu0
    %v2216 = vadd.f32 %v748, %v2215
    %v2217 = vpop.f32.mrf.mxu0
    %2218 = vmatprep.mubr.bf16.mxu0 0
    %2219 = vmatmul.mubr.bf16.gmra.mxu0 %v2136
    %v2220 = vpop.f32.mrf.mxu0
    %v2221 = vadd.f32 %v748, %v2220
    %v2222 = vpop.f32.mrf.mxu0
    %v2223 = vpop.f32.mrf.mxu0
    %v2224 = vadd.f32 %v748, %v2223
    %v2225 = vpop.f32.mrf.mxu0
    %2226 = vmatprep.mubr.bf16.mxu0 0
    %2227 = vmatmul.mubr.bf16.gmra.mxu0 %v2137
    %v2228 = vpop.f32.mrf.mxu0
    %v2229 = vadd.f32 %v748, %v2228
    %v2230 = vpop.f32.mrf.mxu0
    %v2231 = vpop.f32.mrf.mxu0
    %v2232 = vadd.f32 %v748, %v2231
    %v2233 = vpop.f32.mrf.mxu0
    %2234 = vdwg.mxu0
    %v2235 = vadd.f32 %v1993, %v2173
    %v2236 = vadd.f32 %v1994, %v2176
    %v2237 = vadd.f32 %v1995, %v2181
    %v2238 = vadd.f32 %v1996, %v2184
    %v2239 = vadd.f32 %v1997, %v2189
    %v2240 = vadd.f32 %v1998, %v2192
    %v2241 = vadd.f32 %v1999, %v2197
    %v2242 = vadd.f32 %v2000, %v2200
    %v2243 = vadd.f32 %v2001, %v2205
    %v2244 = vadd.f32 %v2002, %v2208
    %v2245 = vadd.f32 %v2003, %v2213
    %v2246 = vadd.f32 %v2004, %v2216
    %v2247 = vadd.f32 %v2005, %v2221
    %v2248 = vadd.f32 %v2006, %v2224
    %v2249 = vadd.f32 %v2007, %v2229
    %v2250 = vadd.f32 %v2008, %v2232
    %v2251 = vmax.f32 %v2235, 0.0
    %v2252 = vmax.f32 %v2236, 0.0
    %v2253 = vmax.f32 %v2237, 0.0
    %v2254 = vmax.f32 %v2238, 0.0
    %v2255 = vmax.f32 %v2239, 0.0
    %v2256 = vmax.f32 %v2240, 0.0
    %v2257 = vmax.f32 %v2241, 0.0
    %v2258 = vmax.f32 %v2242, 0.0
    %v2259 = vmax.f32 %v2243, 0.0
    %v2260 = vmax.f32 %v2244, 0.0
    %v2261 = vmax.f32 %v2245, 0.0
    %v2262 = vmax.f32 %v2246, 0.0
    %v2263 = vmax.f32 %v2247, 0.0
    %v2264 = vmax.f32 %v2248, 0.0
    %v2265 = vmax.f32 %v2249, 0.0
    %v2266 = vmax.f32 %v2250, 0.0
    %v2267 = vpack.c.bf16 %v2252, %v2251
    %v2268 = vpack.c.bf16 %v2254, %v2253
    %v2269 = vpack.c.bf16 %v2256, %v2255
    %v2270 = vpack.c.bf16 %v2258, %v2257
    %v2271 = vpack.c.bf16 %v2260, %v2259
    %v2272 = vpack.c.bf16 %v2262, %v2261
    %v2273 = vpack.c.bf16 %v2264, %v2263
    %v2274 = vpack.c.bf16 %v2266, %v2265
    %2275 = vmatprep.subr.bf16.mxu0 0
    %2276 = vmatpush1.bf16.msra.mxu0 %v977
    %2277 = vmatprep.subr.bf16.mxu0 0
    %2278 = vmatpush1.bf16.msra.mxu0 %v976
    %2279 = vmatprep.subr.bf16.mxu0 0
    %2280 = vmatpush1.bf16.msra.mxu0 %v975
    %2281 = vmatprep.subr.bf16.mxu0 0
    %2282 = vmatpush1.bf16.msra.mxu0 %v974
    %2283 = vmatprep.subr.bf16.mxu0 0
    %2284 = vmatpush1.bf16.msra.mxu0 %v973
    %2285 = vmatprep.subr.bf16.mxu0 0
    %2286 = vmatpush1.bf16.msra.mxu0 %v972
    %2287 = vmatprep.subr.bf16.mxu0 0
    %2288 = vmatpush1.bf16.msra.mxu0 %v971
    %2289 = vmatprep.subr.bf16.mxu0 0
    %2290 = vmatpush1.bf16.msra.mxu0 %v970
    %2291 = vmatprep.subr.bf16.mxu0 0
    %2292 = vmatpush2.bf16.msra.mxu0 0
    %2293 = vmatprep.subr.bf16.mxu0 0
    %2294 = vmatpush2.bf16.msra.mxu0 0
    %2295 = vmatprep.subr.bf16.mxu0 0
    %2296 = vmatpush2.bf16.msra.mxu0 0
    %2297 = vmatprep.subr.bf16.mxu0 0
    %2298 = vmatpush2.bf16.msra.mxu0 0
    %2299 = vmatprep.subr.bf16.mxu0 0
    %2300 = vmatpush2.bf16.msra.mxu0 0
    %2301 = vmatprep.subr.bf16.mxu0 0
    %2302 = vmatpush2.bf16.msra.mxu0 0
    %2303 = vmatprep.subr.bf16.mxu0 0
    %2304 = vmatpush2.bf16.msra.mxu0 0
    %2305 = vmatprep.subr.bf16.mxu0 0
    %2306 = vmatpush2.bf16.msra.mxu0 0
    %2307 = vmatprep.mubr.bf16.mxu0 0
    %2308 = vmatmul.mubr.bf16.gmra.mxu0 %v2267
    %v2309 = vpop.f32.mrf.mxu0
    %v2310 = vadd.f32 %v937, %v2309
    %v2311 = vpop.f32.mrf.mxu0
    %v2312 = vpop.f32.mrf.mxu0
    %v2313 = vadd.f32 %v937, %v2312
    %v2314 = vpop.f32.mrf.mxu0
    %2315 = vmatprep.mubr.bf16.mxu0 0
    %2316 = vmatmul.mubr.bf16.gmra.mxu0 %v2268
    %v2317 = vpop.f32.mrf.mxu0
    %v2318 = vadd.f32 %v937, %v2317
    %v2319 = vpop.f32.mrf.mxu0
    %v2320 = vpop.f32.mrf.mxu0
    %v2321 = vadd.f32 %v937, %v2320
    %v2322 = vpop.f32.mrf.mxu0
    %2323 = vmatprep.mubr.bf16.mxu0 0
    %2324 = vmatmul.mubr.bf16.gmra.mxu0 %v2269
    %v2325 = vpop.f32.mrf.mxu0
    %v2326 = vadd.f32 %v937, %v2325
    %v2327 = vpop.f32.mrf.mxu0
    %v2328 = vpop.f32.mrf.mxu0
    %v2329 = vadd.f32 %v937, %v2328
    %v2330 = vpop.f32.mrf.mxu0
    %2331 = vmatprep.mubr.bf16.mxu0 0
    %2332 = vmatmul.mubr.bf16.gmra.mxu0 %v2270
    %v2333 = vpop.f32.mrf.mxu0
    %v2334 = vadd.f32 %v937, %v2333
    %v2335 = vpop.f32.mrf.mxu0
    %v2336 = vpop.f32.mrf.mxu0
    %v2337 = vadd.f32 %v937, %v2336
    %v2338 = vpop.f32.mrf.mxu0
    %2339 = vmatprep.mubr.bf16.mxu0 0
    %2340 = vmatmul.mubr.bf16.gmra.mxu0 %v2271
    %v2341 = vpop.f32.mrf.mxu0
    %v2342 = vadd.f32 %v937, %v2341
    %v2343 = vpop.f32.mrf.mxu0
    %v2344 = vpop.f32.mrf.mxu0
    %v2345 = vadd.f32 %v937, %v2344
    %v2346 = vpop.f32.mrf.mxu0
    %2347 = vmatprep.mubr.bf16.mxu0 0
    %2348 = vmatmul.mubr.bf16.gmra.mxu0 %v2272
    %v2349 = vpop.f32.mrf.mxu0
    %v2350 = vadd.f32 %v937, %v2349
    %v2351 = vpop.f32.mrf.mxu0
    %v2352 = vpop.f32.mrf.mxu0
    %v2353 = vadd.f32 %v937, %v2352
    %v2354 = vpop.f32.mrf.mxu0
    %2355 = vmatprep.mubr.bf16.mxu0 0
    %2356 = vmatmul.mubr.bf16.gmra.mxu0 %v2273
    %v2357 = vpop.f32.mrf.mxu0
    %v2358 = vadd.f32 %v937, %v2357
    %v2359 = vpop.f32.mrf.mxu0
    %v2360 = vpop.f32.mrf.mxu0
    %v2361 = vadd.f32 %v937, %v2360
    %v2362 = vpop.f32.mrf.mxu0
    %2363 = vmatprep.mubr.bf16.mxu0 0
    %2364 = vmatmul.mubr.bf16.gmra.mxu0 %v2274
    %v2365 = vpop.f32.mrf.mxu0
    %v2366 = vadd.f32 %v937, %v2365
    %v2367 = vpop.f32.mrf.mxu0
    %v2368 = vpop.f32.mrf.mxu0
    %v2369 = vadd.f32 %v937, %v2368
    %v2370 = vpop.f32.mrf.mxu0
    %2371 = vdwg.mxu0
    %v2372 = vmax.f32 %v2310, 0.0
    %v2373 = vmax.f32 %v2313, 0.0
    %v2374 = vmax.f32 %v2318, 0.0
    %v2375 = vmax.f32 %v2321, 0.0
    %v2376 = vmax.f32 %v2326, 0.0
    %v2377 = vmax.f32 %v2329, 0.0
    %v2378 = vmax.f32 %v2334, 0.0
    %v2379 = vmax.f32 %v2337, 0.0
    %v2380 = vmax.f32 %v2342, 0.0
    %v2381 = vmax.f32 %v2345, 0.0
    %v2382 = vmax.f32 %v2350, 0.0
    %v2383 = vmax.f32 %v2353, 0.0
    %v2384 = vmax.f32 %v2358, 0.0
    %v2385 = vmax.f32 %v2361, 0.0
    %v2386 = vmax.f32 %v2366, 0.0
    %v2387 = vmax.f32 %v2369, 0.0
    %v2388 = vpack.c.bf16 %v2373, %v2372
    %v2389 = vpack.c.bf16 %v2375, %v2374
    %v2390 = vpack.c.bf16 %v2377, %v2376
    %v2391 = vpack.c.bf16 %v2379, %v2378
    %v2392 = vpack.c.bf16 %v2381, %v2380
    %v2393 = vpack.c.bf16 %v2383, %v2382
    %v2394 = vpack.c.bf16 %v2385, %v2384
    %v2395 = vpack.c.bf16 %v2387, %v2386
    %2396 = vmatprep.subr.bf16.mxu0 0
    %2397 = vmatpush1.bf16.msra.mxu0 %v1150
    %2398 = vmatprep.subr.bf16.mxu0 0
    %2399 = vmatpush1.bf16.msra.mxu0 %v1149
    %2400 = vmatprep.subr.bf16.mxu0 0
    %2401 = vmatpush1.bf16.msra.mxu0 %v1148
    %2402 = vmatprep.subr.bf16.mxu0 0
    %2403 = vmatpush1.bf16.msra.mxu0 %v1147
    %2404 = vmatprep.subr.bf16.mxu0 0
    %2405 = vmatpush1.bf16.msra.mxu0 %v1146
    %2406 = vmatprep.subr.bf16.mxu0 0
    %2407 = vmatpush1.bf16.msra.mxu0 %v1145
    %2408 = vmatprep.subr.bf16.mxu0 0
    %2409 = vmatpush1.bf16.msra.mxu0 %v1144
    %2410 = vmatprep.subr.bf16.mxu0 0
    %2411 = vmatpush1.bf16.msra.mxu0 %v1143
    %2412 = vmatprep.subr.bf16.mxu0 0
    %2413 = vmatpush2.bf16.msra.mxu0 0
    %2414 = vmatprep.subr.bf16.mxu0 0
    %2415 = vmatpush2.bf16.msra.mxu0 0
    %2416 = vmatprep.subr.bf16.mxu0 0
    %2417 = vmatpush2.bf16.msra.mxu0 0
    %2418 = vmatprep.subr.bf16.mxu0 0
    %2419 = vmatpush2.bf16.msra.mxu0 0
    %2420 = vmatprep.subr.bf16.mxu0 0
    %2421 = vmatpush2.bf16.msra.mxu0 0
    %2422 = vmatprep.subr.bf16.mxu0 0
    %2423 = vmatpush2.bf16.msra.mxu0 0
    %2424 = vmatprep.subr.bf16.mxu0 0
    %2425 = vmatpush2.bf16.msra.mxu0 0
    %2426 = vmatprep.subr.bf16.mxu0 0
    %2427 = vmatpush2.bf16.msra.mxu0 0
    %2428 = vmatprep.mubr.bf16.mxu0 0
    %2429 = vmatmul.mubr.bf16.gmra.mxu0 %v2388
    %v2430 = vpop.f32.mrf.mxu0
    %v2431 = vadd.f32 %v1110, %v2430
    %v2432 = vpop.f32.mrf.mxu0
    %v2433 = vpop.f32.mrf.mxu0
    %v2434 = vadd.f32 %v1110, %v2433
    %v2435 = vpop.f32.mrf.mxu0
    %2436 = vmatprep.mubr.bf16.mxu0 0
    %2437 = vmatmul.mubr.bf16.gmra.mxu0 %v2389
    %v2438 = vpop.f32.mrf.mxu0
    %v2439 = vadd.f32 %v1110, %v2438
    %v2440 = vpop.f32.mrf.mxu0
    %v2441 = vpop.f32.mrf.mxu0
    %v2442 = vadd.f32 %v1110, %v2441
    %v2443 = vpop.f32.mrf.mxu0
    %2444 = vmatprep.mubr.bf16.mxu0 0
    %2445 = vmatmul.mubr.bf16.gmra.mxu0 %v2390
    %v2446 = vpop.f32.mrf.mxu0
    %v2447 = vadd.f32 %v1110, %v2446
    %v2448 = vpop.f32.mrf.mxu0
    %v2449 = vpop.f32.mrf.mxu0
    %v2450 = vadd.f32 %v1110, %v2449
    %v2451 = vpop.f32.mrf.mxu0
    %2452 = vmatprep.mubr.bf16.mxu0 0
    %2453 = vmatmul.mubr.bf16.gmra.mxu0 %v2391
    %v2454 = vpop.f32.mrf.mxu0
    %v2455 = vadd.f32 %v1110, %v2454
    %v2456 = vpop.f32.mrf.mxu0
    %v2457 = vpop.f32.mrf.mxu0
    %v2458 = vadd.f32 %v1110, %v2457
    %v2459 = vpop.f32.mrf.mxu0
    %2460 = vmatprep.mubr.bf16.mxu0 0
    %2461 = vmatmul.mubr.bf16.gmra.mxu0 %v2392
    %v2462 = vpop.f32.mrf.mxu0
    %v2463 = vadd.f32 %v1110, %v2462
    %v2464 = vpop.f32.mrf.mxu0
    %v2465 = vpop.f32.mrf.mxu0
    %v2466 = vadd.f32 %v1110, %v2465
    %v2467 = vpop.f32.mrf.mxu0
    %2468 = vmatprep.mubr.bf16.mxu0 0
    %2469 = vmatmul.mubr.bf16.gmra.mxu0 %v2393
    %v2470 = vpop.f32.mrf.mxu0
    %v2471 = vadd.f32 %v1110, %v2470
    %v2472 = vpop.f32.mrf.mxu0
    %v2473 = vpop.f32.mrf.mxu0
    %v2474 = vadd.f32 %v1110, %v2473
    %v2475 = vpop.f32.mrf.mxu0
    %2476 = vmatprep.mubr.bf16.mxu0 0
    %2477 = vmatmul.mubr.bf16.gmra.mxu0 %v2394
    %v2478 = vpop.f32.mrf.mxu0
    %v2479 = vadd.f32 %v1110, %v2478
    %v2480 = vpop.f32.mrf.mxu0
    %v2481 = vpop.f32.mrf.mxu0
    %v2482 = vadd.f32 %v1110, %v2481
    %v2483 = vpop.f32.mrf.mxu0
    %2484 = vmatprep.mubr.bf16.mxu0 0
    %2485 = vmatmul.mubr.bf16.gmra.mxu0 %v2395
    %v2486 = vpop.f32.mrf.mxu0
    %v2487 = vadd.f32 %v1110, %v2486
    %v2488 = vpop.f32.mrf.mxu0
    %v2489 = vpop.f32.mrf.mxu0
    %v2490 = vadd.f32 %v1110, %v2489
    %v2491 = vpop.f32.mrf.mxu0
    %2492 = vdwg.mxu0
    %v2493 = vadd.f32 %v2251, %v2431
    %v2494 = vadd.f32 %v2252, %v2434
    %v2495 = vadd.f32 %v2253, %v2439
    %v2496 = vadd.f32 %v2254, %v2442
    %v2497 = vadd.f32 %v2255, %v2447
    %v2498 = vadd.f32 %v2256, %v2450
    %v2499 = vadd.f32 %v2257, %v2455
    %v2500 = vadd.f32 %v2258, %v2458
    %v2501 = vadd.f32 %v2259, %v2463
    %v2502 = vadd.f32 %v2260, %v2466
    %v2503 = vadd.f32 %v2261, %v2471
    %v2504 = vadd.f32 %v2262, %v2474
    %v2505 = vadd.f32 %v2263, %v2479
    %v2506 = vadd.f32 %v2264, %v2482
    %v2507 = vadd.f32 %v2265, %v2487
    %v2508 = vadd.f32 %v2266, %v2490
    %v2509 = vmax.f32 %v2493, 0.0
    %v2510 = vmax.f32 %v2494, 0.0
    %v2511 = vmax.f32 %v2495, 0.0
    %v2512 = vmax.f32 %v2496, 0.0
    %v2513 = vmax.f32 %v2497, 0.0
    %v2514 = vmax.f32 %v2498, 0.0
    %v2515 = vmax.f32 %v2499, 0.0
    %v2516 = vmax.f32 %v2500, 0.0
    %v2517 = vmax.f32 %v2501, 0.0
    %v2518 = vmax.f32 %v2502, 0.0
    %v2519 = vmax.f32 %v2503, 0.0
    %v2520 = vmax.f32 %v2504, 0.0
    %v2521 = vmax.f32 %v2505, 0.0
    %v2522 = vmax.f32 %v2506, 0.0
    %v2523 = vmax.f32 %v2507, 0.0
    %v2524 = vmax.f32 %v2508, 0.0
    %v2525 = vadd.f32 %v2509, %v1291
    %v2526 = vadd.f32 %v2510, %v1291
    %v2527 = vadd.f32 %v2511, %v1291
    %v2528 = vadd.f32 %v2512, %v1291
    %v2529 = vadd.f32 %v2513, %v1291
    %v2530 = vadd.f32 %v2514, %v1291
    %v2531 = vadd.f32 %v2515, %v1291
    %v2532 = vadd.f32 %v2516, %v1291
    %v2533 = vadd.f32 %v2517, %v1291
    %v2534 = vadd.f32 %v2518, %v1291
    %v2535 = vadd.f32 %v2519, %v1291
    %v2536 = vadd.f32 %v2520, %v1291
    %v2537 = vadd.f32 %v2521, %v1291
    %v2538 = vadd.f32 %v2522, %v1291
    %v2539 = vadd.f32 %v2523, %v1291
    %v2540 = vadd.f32 %v2524, %v1291
    %vm2541 = vcmp.eq.f32.partialorder %v1577, 0.0
    %vm2542 = vcmp.eq.f32.partialorder %v1578, 0.0
    %vm2543 = vcmp.eq.f32.partialorder %v1579, 0.0
    %vm2544 = vcmp.eq.f32.partialorder %v1580, 0.0
    %vm2545 = vcmp.eq.f32.partialorder %v1581, 0.0
    %vm2546 = vcmp.eq.f32.partialorder %v1582, 0.0
    %vm2547 = vcmp.eq.f32.partialorder %v1583, 0.0
    %vm2548 = vcmp.eq.f32.partialorder %v1584, 0.0
    %vm2549 = vcmp.eq.f32.partialorder %v1585, 0.0
    %vm2550 = vcmp.eq.f32.partialorder %v1586, 0.0
    %vm2551 = vcmp.eq.f32.partialorder %v1587, 0.0
    %vm2552 = vcmp.eq.f32.partialorder %v1588, 0.0
    %vm2553 = vcmp.eq.f32.partialorder %v1589, 0.0
    %vm2554 = vcmp.eq.f32.partialorder %v1590, 0.0
    %vm2555 = vcmp.eq.f32.partialorder %v1591, 0.0
    %vm2556 = vcmp.eq.f32.partialorder %v1592, 0.0
    %v2557 = vsel %vm2541, 1, 0
    %v2558 = vsel %vm2542, 1, 0
    %v2559 = vsel %vm2543, 1, 0
    %v2560 = vsel %vm2544, 1, 0
    %v2561 = vsel %vm2545, 1, 0
    %v2562 = vsel %vm2546, 1, 0
    %v2563 = vsel %vm2547, 1, 0
    %v2564 = vsel %vm2548, 1, 0
    %v2565 = vsel %vm2549, 1, 0
    %v2566 = vsel %vm2550, 1, 0
    %v2567 = vsel %vm2551, 1, 0
    %v2568 = vsel %vm2552, 1, 0
    %v2569 = vsel %vm2553, 1, 0
    %v2570 = vsel %vm2554, 1, 0
    %v2571 = vsel %vm2555, 1, 0
    %v2572 = vsel %vm2556, 1, 0
    %2573 = vset.pattern.permute.xlu0 0
    %2574 = vperm.xlu0 %2573, %v2557
    %v2575 = vpop.permute.xlu0 %2574
    %2576 = vset.pattern.permute.xlu0 0
    %2577 = vperm.xlu0 %2576, %v2558
    %v2578 = vpop.permute.xlu0 %2577
    %2579 = vset.pattern.permute.xlu0 0
    %2580 = vperm.xlu0 %2579, %v2559
    %v2581 = vpop.permute.xlu0 %2580
    %2582 = vset.pattern.permute.xlu0 0
    %2583 = vperm.xlu0 %2582, %v2560
    %v2584 = vpop.permute.xlu0 %2583
    %2585 = vset.pattern.permute.xlu0 0
    %2586 = vperm.xlu0 %2585, %v2561
    %v2587 = vpop.permute.xlu0 %2586
    %2588 = vset.pattern.permute.xlu0 0
    %2589 = vperm.xlu0 %2588, %v2562
    %v2590 = vpop.permute.xlu0 %2589
    %2591 = vset.pattern.permute.xlu0 0
    %2592 = vperm.xlu0 %2591, %v2563
    %v2593 = vpop.permute.xlu0 %2592
    %2594 = vset.pattern.permute.xlu0 0
    %2595 = vperm.xlu0 %2594, %v2564
    %v2596 = vpop.permute.xlu0 %2595
    %2597 = vset.pattern.permute.xlu0 0
    %2598 = vperm.xlu0 %2597, %v2565
    %v2599 = vpop.permute.xlu0 %2598
    %2600 = vset.pattern.permute.xlu0 0
    %2601 = vperm.xlu0 %2600, %v2566
    %v2602 = vpop.permute.xlu0 %2601
    %2603 = vset.pattern.permute.xlu0 0
    %2604 = vperm.xlu0 %2603, %v2567
    %v2605 = vpop.permute.xlu0 %2604
    %2606 = vset.pattern.permute.xlu0 0
    %2607 = vperm.xlu0 %2606, %v2568
    %v2608 = vpop.permute.xlu0 %2607
    %2609 = vset.pattern.permute.xlu0 0
    %2610 = vperm.xlu0 %2609, %v2569
    %v2611 = vpop.permute.xlu0 %2610
    %2612 = vset.pattern.permute.xlu0 0
    %2613 = vperm.xlu0 %2612, %v2570
    %v2614 = vpop.permute.xlu0 %2613
    %2615 = vset.pattern.permute.xlu0 0
    %2616 = vperm.xlu0 %2615, %v2571
    %v2617 = vpop.permute.xlu0 %2616
    %2618 = vset.pattern.permute.xlu0 0
    %2619 = vperm.xlu0 %2618, %v2572
    %v2620 = vpop.permute.xlu0 %2619
    %vm2621 = vcmp.eq.s32.totalorder %v2575, 1
    %vm2622 = vcmp.eq.s32.totalorder %v2578, 1
    %vm2623 = vcmp.eq.s32.totalorder %v2581, 1
    %vm2624 = vcmp.eq.s32.totalorder %v2584, 1
    %vm2625 = vcmp.eq.s32.totalorder %v2587, 1
    %vm2626 = vcmp.eq.s32.totalorder %v2590, 1
    %vm2627 = vcmp.eq.s32.totalorder %v2593, 1
    %vm2628 = vcmp.eq.s32.totalorder %v2596, 1
    %vm2629 = vcmp.eq.s32.totalorder %v2599, 1
    %vm2630 = vcmp.eq.s32.totalorder %v2602, 1
    %vm2631 = vcmp.eq.s32.totalorder %v2605, 1
    %vm2632 = vcmp.eq.s32.totalorder %v2608, 1
    %vm2633 = vcmp.eq.s32.totalorder %v2611, 1
    %vm2634 = vcmp.eq.s32.totalorder %v2614, 1
    %vm2635 = vcmp.eq.s32.totalorder %v2617, 1
    %vm2636 = vcmp.eq.s32.totalorder %v2620, 1
    %v2637 = vsel %vm2621, %v2525, 0.0
    %v2638 = vsel %vm2622, %v2526, 0.0
    %v2639 = vsel %vm2623, %v2527, 0.0
    %v2640 = vsel %vm2624, %v2528, 0.0
    %v2641 = vsel %vm2625, %v2529, 0.0
    %v2642 = vsel %vm2626, %v2530, 0.0
    %v2643 = vsel %vm2627, %v2531, 0.0
    %v2644 = vsel %vm2628, %v2532, 0.0
    %v2645 = vsel %vm2629, %v2533, 0.0
    %v2646 = vsel %vm2630, %v2534, 0.0
    %v2647 = vsel %vm2631, %v2535, 0.0
    %v2648 = vsel %vm2632, %v2536, 0.0
    %v2649 = vsel %vm2633, %v2537, 0.0
    %v2650 = vsel %vm2634, %v2538, 0.0
    %v2651 = vsel %vm2635, %v2539, 0.0
    %v2652 = vsel %vm2636, %v2540, 0.0
    %v2653 = vadd.f32 %v2637, %v2638
    %v2654 = vadd.f32 %v2653, %v2639
    %v2655 = vadd.f32 %v2654, %v2640
    %v2656 = vadd.f32 %v2655, %v2641
    %v2657 = vadd.f32 %v2656, %v2642
    %v2658 = vadd.f32 %v2657, %v2643
    %v2659 = vadd.f32 %v2658, %v2644
    %v2660 = vadd.f32 %v2659, %v2645
    %v2661 = vadd.f32 %v2660, %v2646
    %v2662 = vadd.f32 %v2661, %v2647
    %v2663 = vadd.f32 %v2662, %v2648
    %v2664 = vadd.f32 %v2663, %v2649
    %v2665 = vadd.f32 %v2664, %v2650
    %v2666 = vadd.f32 %v2665, %v2651
    %v2667 = vadd.f32 %v2666, %v2652
    %v2668 = vrot.slane %v2667, 4
    %v2669 = vadd.f32 %v2667, %v2668
    %v2670 = vrot.slane %v2669, 2
    %v2671 = vadd.f32 %v2669, %v2670
    %v2672 = vrot.slane %v2671, 1
    %v2673 = vadd.f32 %v2671, %v2672
    %v2674 = vadd.f32 %v1441, %v2673
    %vm2675 = vcmp.eq.f32.partialorder %v1577, 1.0
    %vm2676 = vcmp.eq.f32.partialorder %v1578, 1.0
    %vm2677 = vcmp.eq.f32.partialorder %v1579, 1.0
    %vm2678 = vcmp.eq.f32.partialorder %v1580, 1.0
    %vm2679 = vcmp.eq.f32.partialorder %v1581, 1.0
    %vm2680 = vcmp.eq.f32.partialorder %v1582, 1.0
    %vm2681 = vcmp.eq.f32.partialorder %v1583, 1.0
    %vm2682 = vcmp.eq.f32.partialorder %v1584, 1.0
    %vm2683 = vcmp.eq.f32.partialorder %v1585, 1.0
    %vm2684 = vcmp.eq.f32.partialorder %v1586, 1.0
    %vm2685 = vcmp.eq.f32.partialorder %v1587, 1.0
    %vm2686 = vcmp.eq.f32.partialorder %v1588, 1.0
    %vm2687 = vcmp.eq.f32.partialorder %v1589, 1.0
    %vm2688 = vcmp.eq.f32.partialorder %v1590, 1.0
    %vm2689 = vcmp.eq.f32.partialorder %v1591, 1.0
    %vm2690 = vcmp.eq.f32.partialorder %v1592, 1.0
    %v2691 = vsel %vm2675, 1, 0
    %v2692 = vsel %vm2676, 1, 0
    %v2693 = vsel %vm2677, 1, 0
    %v2694 = vsel %vm2678, 1, 0
    %v2695 = vsel %vm2679, 1, 0
    %v2696 = vsel %vm2680, 1, 0
    %v2697 = vsel %vm2681, 1, 0
    %v2698 = vsel %vm2682, 1, 0
    %v2699 = vsel %vm2683, 1, 0
    %v2700 = vsel %vm2684, 1, 0
    %v2701 = vsel %vm2685, 1, 0
    %v2702 = vsel %vm2686, 1, 0
    %v2703 = vsel %vm2687, 1, 0
    %v2704 = vsel %vm2688, 1, 0
    %v2705 = vsel %vm2689, 1, 0
    %v2706 = vsel %vm2690, 1, 0
    %2707 = vset.pattern.permute.xlu0 0
    %2708 = vperm.xlu0 %2707, %v2691
    %v2709 = vpop.permute.xlu0 %2708
    %2710 = vset.pattern.permute.xlu0 0
    %2711 = vperm.xlu0 %2710, %v2692
    %v2712 = vpop.permute.xlu0 %2711
    %2713 = vset.pattern.permute.xlu0 0
    %2714 = vperm.xlu0 %2713, %v2693
    %v2715 = vpop.permute.xlu0 %2714
    %2716 = vset.pattern.permute.xlu0 0
    %2717 = vperm.xlu0 %2716, %v2694
    %v2718 = vpop.permute.xlu0 %2717
    %2719 = vset.pattern.permute.xlu0 0
    %2720 = vperm.xlu0 %2719, %v2695
    %v2721 = vpop.permute.xlu0 %2720
    %2722 = vset.pattern.permute.xlu0 0
    %2723 = vperm.xlu0 %2722, %v2696
    %v2724 = vpop.permute.xlu0 %2723
    %2725 = vset.pattern.permute.xlu0 0
    %2726 = vperm.xlu0 %2725, %v2697
    %v2727 = vpop.permute.xlu0 %2726
    %2728 = vset.pattern.permute.xlu0 0
    %2729 = vperm.xlu0 %2728, %v2698
    %v2730 = vpop.permute.xlu0 %2729
    %2731 = vset.pattern.permute.xlu0 0
    %2732 = vperm.xlu0 %2731, %v2699
    %v2733 = vpop.permute.xlu0 %2732
    %2734 = vset.pattern.permute.xlu0 0
    %2735 = vperm.xlu0 %2734, %v2700
    %v2736 = vpop.permute.xlu0 %2735
    %2737 = vset.pattern.permute.xlu0 0
    %2738 = vperm.xlu0 %2737, %v2701
    %v2739 = vpop.permute.xlu0 %2738
    %2740 = vset.pattern.permute.xlu0 0
    %2741 = vperm.xlu0 %2740, %v2702
    %v2742 = vpop.permute.xlu0 %2741
    %2743 = vset.pattern.permute.xlu0 0
    %2744 = vperm.xlu0 %2743, %v2703
    %v2745 = vpop.permute.xlu0 %2744
    %2746 = vset.pattern.permute.xlu0 0
    %2747 = vperm.xlu0 %2746, %v2704
    %v2748 = vpop.permute.xlu0 %2747
    %2749 = vset.pattern.permute.xlu0 0
    %2750 = vperm.xlu0 %2749, %v2705
    %v2751 = vpop.permute.xlu0 %2750
    %2752 = vset.pattern.permute.xlu0 0
    %2753 = vperm.xlu0 %2752, %v2706
    %v2754 = vpop.permute.xlu0 %2753
    %vm2755 = vcmp.eq.s32.totalorder %v2709, 1
    %vm2756 = vcmp.eq.s32.totalorder %v2712, 1
    %vm2757 = vcmp.eq.s32.totalorder %v2715, 1
    %vm2758 = vcmp.eq.s32.totalorder %v2718, 1
    %vm2759 = vcmp.eq.s32.totalorder %v2721, 1
    %vm2760 = vcmp.eq.s32.totalorder %v2724, 1
    %vm2761 = vcmp.eq.s32.totalorder %v2727, 1
    %vm2762 = vcmp.eq.s32.totalorder %v2730, 1
    %vm2763 = vcmp.eq.s32.totalorder %v2733, 1
    %vm2764 = vcmp.eq.s32.totalorder %v2736, 1
    %vm2765 = vcmp.eq.s32.totalorder %v2739, 1
    %vm2766 = vcmp.eq.s32.totalorder %v2742, 1
    %vm2767 = vcmp.eq.s32.totalorder %v2745, 1
    %vm2768 = vcmp.eq.s32.totalorder %v2748, 1
    %vm2769 = vcmp.eq.s32.totalorder %v2751, 1
    %vm2770 = vcmp.eq.s32.totalorder %v2754, 1
    %v2771 = vsel %vm2755, %v2525, 0.0
    %v2772 = vsel %vm2756, %v2526, 0.0
    %v2773 = vsel %vm2757, %v2527, 0.0
    %v2774 = vsel %vm2758, %v2528, 0.0
    %v2775 = vsel %vm2759, %v2529, 0.0
    %v2776 = vsel %vm2760, %v2530, 0.0
    %v2777 = vsel %vm2761, %v2531, 0.0
    %v2778 = vsel %vm2762, %v2532, 0.0
    %v2779 = vsel %vm2763, %v2533, 0.0
    %v2780 = vsel %vm2764, %v2534, 0.0
    %v2781 = vsel %vm2765, %v2535, 0.0
    %v2782 = vsel %vm2766, %v2536, 0.0
    %v2783 = vsel %vm2767, %v2537, 0.0
    %v2784 = vsel %vm2768, %v2538, 0.0
    %v2785 = vsel %vm2769, %v2539, 0.0
    %v2786 = vsel %vm2770, %v2540, 0.0
    %v2787 = vadd.f32 %v2771, %v2772
    %v2788 = vadd.f32 %v2787, %v2773
    %v2789 = vadd.f32 %v2788, %v2774
    %v2790 = vadd.f32 %v2789, %v2775
    %v2791 = vadd.f32 %v2790, %v2776
    %v2792 = vadd.f32 %v2791, %v2777
    %v2793 = vadd.f32 %v2792, %v2778
    %v2794 = vadd.f32 %v2793, %v2779
    %v2795 = vadd.f32 %v2794, %v2780
    %v2796 = vadd.f32 %v2795, %v2781
    %v2797 = vadd.f32 %v2796, %v2782
    %v2798 = vadd.f32 %v2797, %v2783
    %v2799 = vadd.f32 %v2798, %v2784
    %v2800 = vadd.f32 %v2799, %v2785
    %v2801 = vadd.f32 %v2800, %v2786
    %v2802 = vrot.slane %v2801, 4
    %v2803 = vadd.f32 %v2801, %v2802
    %v2804 = vrot.slane %v2803, 2
    %v2805 = vadd.f32 %v2803, %v2804
    %v2806 = vrot.slane %v2805, 1
    %v2807 = vadd.f32 %v2805, %v2806
    %v2808 = vadd.f32 %v1575, %v2807
    %vm2809 = vcmask 1040384
    %v2810 = vsel %vm2809, %v2674, %v2808
    %v2811 = vmax.f32 %v2810, 1.0
    %v2812 = vrcp.pop %v2811
    %2814 = vset.pattern.permute.xlu0 32
    %2815 = vperm.xlu0 %2814, %v2812
    %v2816 = vpop.permute.xlu0 %2815
    %v2818 = vmul.f32 %v2810, %v2816
    %v2819 = vpack.c.bf16 %v2818, %v2818
    %v2820 = vlaneseq
    %v2821 = vshrl.u32 %v2820, 7
    %v2822 = vsub.s32 1, %v2821
    %v2823 = vrot.slane %v31, %v2822
    %v2840 = vunpack.c.l.b16 %v96
    %v2841 = vunpack.c.l.b16 %v97
    %v2842 = vunpack.c.l.b16 %v98
    %v2843 = vunpack.c.l.b16 %v99
    %v2844 = vunpack.c.l.b16 %v100
    %v2845 = vunpack.c.l.b16 %v101
    %v2846 = vunpack.c.l.b16 %v102
    %v2847 = vunpack.c.l.b16 %v103
    %v2848 = vunpack.c.l.b16 %v104
    %v2849 = vunpack.c.l.b16 %v105
    %v2850 = vunpack.c.l.b16 %v106
    %v2851 = vunpack.c.l.b16 %v107
    %v2852 = vunpack.c.l.b16 %v108
    %v2853 = vunpack.c.l.b16 %v109
    %v2854 = vunpack.c.l.b16 %v110
    %v2855 = vunpack.c.l.b16 %v111
    %v2856 = vpack.c.b16 %v2841, %v2840
    %v2857 = vpack.c.b16 %v2843, %v2842
    %v2858 = vpack.c.b16 %v2845, %v2844
    %v2859 = vpack.c.b16 %v2847, %v2846
    %v2860 = vpack.c.b16 %v2849, %v2848
    %v2861 = vpack.c.b16 %v2851, %v2850
    %v2862 = vpack.c.b16 %v2853, %v2852
    %v2863 = vpack.c.b16 %v2855, %v2854
    %2872 = vmatprep.subr.bf16.mxu0 0
    %2873 = vmatpush1.bf16.msra.mxu0 %v2863
    %2874 = vmatprep.subr.bf16.mxu0 0
    %2875 = vmatpush1.bf16.msra.mxu0 %v2862
    %2876 = vmatprep.subr.bf16.mxu0 0
    %2877 = vmatpush1.bf16.msra.mxu0 %v2861
    %2878 = vmatprep.subr.bf16.mxu0 0
    %2879 = vmatpush1.bf16.msra.mxu0 %v2860
    %2880 = vmatprep.subr.bf16.mxu0 0
    %2881 = vmatpush1.bf16.msra.mxu0 %v2859
    %2882 = vmatprep.subr.bf16.mxu0 0
    %2883 = vmatpush1.bf16.msra.mxu0 %v2858
    %2884 = vmatprep.subr.bf16.mxu0 0
    %2885 = vmatpush1.bf16.msra.mxu0 %v2857
    %2886 = vmatprep.subr.bf16.mxu0 0
    %2887 = vmatpush1.bf16.msra.mxu0 %v2856
    %2888 = vmatprep.subr.bf16.mxu0 0
    %2889 = vmatpush2.bf16.msra.mxu0 0
    %2890 = vmatprep.subr.bf16.mxu0 0
    %2891 = vmatpush2.bf16.msra.mxu0 0
    %2892 = vmatprep.subr.bf16.mxu0 0
    %2893 = vmatpush2.bf16.msra.mxu0 0
    %2894 = vmatprep.subr.bf16.mxu0 0
    %2895 = vmatpush2.bf16.msra.mxu0 0
    %2896 = vmatprep.subr.bf16.mxu0 0
    %2897 = vmatpush2.bf16.msra.mxu0 0
    %2898 = vmatprep.subr.bf16.mxu0 0
    %2899 = vmatpush2.bf16.msra.mxu0 0
    %2900 = vmatprep.subr.bf16.mxu0 0
    %2901 = vmatpush2.bf16.msra.mxu0 0
    %2902 = vmatprep.subr.bf16.mxu0 0
    %2903 = vmatpush2.bf16.msra.mxu0 0
    %2904 = vmatprep.mubr.bf16.mxu0 0
    %2905 = vmatmul.mubr.bf16.gmra.mxu0 %v2819
    %v2906 = vpop.f32.mrf.mxu0
    %v2907 = vadd.f32 %v2823, %v2906
    %v2908 = vpop.f32.mrf.mxu0
    %v2909 = vpop.f32.mrf.mxu0
    %v2910 = vpop.f32.mrf.mxu0
    %2911 = vdwg.mxu0
    %2912 = vst [vmem:[#allocation5] sm:$0x3] %v2907
    // Predicated region
    $region18: #{_forward.1} parent=1 // pred_check
      _
    $region19: #{_forward.1} parent=1 // pred_check_branch
      %2914 = sbr.rel (0) target = $region21
    $region20: #{_forward.1} parent=1 // pred_region
      %s2916 = ssub.s32 32, 32
      %2917 = vsyncadd [#allocation4], %s2916
      %s2919 = sshll.u32 [#allocation5], 4
      %s2920 = int_to_ptr.vmem [resolvable:$true] %s2919
      %2922 = dma.vmem_to_hbm [thread:$0]  %s2920, 32, %s3, [#allocation4]
    $region21: #{_forward.1} parent=1 // pred_fallthru
      _
    // Predicated region
    $region22: #{_forward.1} parent=1 // pred_check
      _
    $region23: #{_forward.1} parent=1 // pred_check_branch
      %2924 = sbr.rel (0) target = $region25
    $region24: #{_forward.1} parent=1 // pred_region
      %2925 = dma.done [#allocation4], 32
    $region25: #{_forward.1} parent=1 // pred_fallthru
      _
    %2926 = vsyncpa [#allocation3], 1
    %2927 = vsyncpa [#allocation4], 1

</llo_original>
